<compile_context>
chip_gen: v6e
topology: v6e:2x2x1
jax: 0.10.0
libtpu: 0.0.40
codegen_flags: <defaults>
</compile_context>

<pallas_src>
import functools

import jax
import jax.numpy as jnp
from jax.experimental import pallas as pl
from jax.experimental.pallas import tpu as pltpu


def _up_conv_kernel(x_ref, w_ref, shift_ref, o_ref, *, TH, W, Cin, Cout):
    """One (batch, output-row-tile) grid step.

    x_ref    : (1, H+2, W+2, Cin)   bf16 zero-padded ORIGINAL-resolution image
                                    (resident in VMEM across the row-tile axis)
    w_ref    : (4, 4*Cin, Cout)     bf16 BN-scale-folded, tap-concatenated phase
                                    weights [phase = 2*pi+pj, K = (2*dy+dx)*Cin + cin]
    shift_ref: (1, Cout)            f32  beta + scale * (conv_bias - mean)
    o_ref    : (1, 4, TH*W, Cout)   bf16 phase-separated output rows of this tile
    """
    t = pl.program_id(1)
    row0 = pl.multiple_of(t * TH, TH)          # first original row of this tile

    # Hoisted row-band loads: only 3 distinct row offsets (pi+dy in {0,1,2}).
    # The 3 column shifts are static slices of the resident band values.
    cols = []
    for r in range(3):
        band = x_ref[0, pl.ds(row0 + r, TH), :, :]               # (TH, W+2, Cin) bf16
        cols.append([band[:, c:c + W, :].reshape(TH * W, Cin) for c in range(3)])

    # Epilogue operand hoisted out of the unrolled phase loop (one broadcast total).
    shift = jnp.broadcast_to(shift_ref[...], (TH * W, Cout))     # f32

    for pi in range(2):
        for pj in range(2):
            # Tap-concatenated im2col: one K = 4*Cin MXU matmul per phase.
            patch = jnp.concatenate(
                [cols[pi + dy][pj + dx] for dy in range(2) for dx in range(2)],
                axis=-1)                                         # (TH*W, 4*Cin) bf16
            acc = jnp.dot(patch, w_ref[2 * pi + pj],
                          preferred_element_type=jnp.float32)    # (TH*W, Cout) f32
            y = jnp.maximum(acc + shift, 0.0)                    # BN shift + ReLU (f32)
            o_ref[0, 2 * pi + pj] = y.astype(o_ref.dtype)        # bf16 store, no reshape


def _vmem_capacity_bytes():
    # v5e/v6e: 128 MiB per TensorCore; v7x: 64 MiB.  Fall back conservatively.
    try:
        cap = getattr(pltpu.get_tpu_info(), "vmem_capacity_bytes", None)
        if cap:
            return int(cap)
    except Exception:
        pass
    return 64 * 1024 * 1024


def _pick_row_tile(H, W, Cout, tile_budget_bytes):
    """Largest row tile TH with H % TH == 0, >= 2 grid steps (pipeline depth /
    megacore), a bf16-friendly store shape (TH*W multiple of 16), and a
    double-buffered 4-phase bf16 output tile within budget.  Falls back to H."""
    per_row = 2 * 4 * W * Cout * 2            # double-buffered, 4 phases, bf16
    best = None
    for d in range(1, max(H // 2, 1) + 1):
        if H % d:
            continue
        if (d * W) % 16:
            continue
        if d * per_row > tile_budget_bytes:
            continue
        best = d
    return best if best is not None else H


def up_conv_forward(x_nchw, weight, conv_bias, gamma, beta,
                    running_mean, running_var, eps=1e-5):
    """x_nchw: (N, Cin, H, W) float32 -> (N, Cout, 2H, 2W) float32 (eval-mode BN)."""
    N, Cin, H, W = x_nchw.shape
    Cout = weight.shape[0]

    vmem_cap = _vmem_capacity_bytes()
    vmem_limit = min(int(0.75 * vmem_cap), 100 * 1024 * 1024)   # 96 MiB on 128 MiB parts, 48 MiB on v7x
    TH = _pick_row_tile(H, W, Cout, max(1 << 20, vmem_limit // 6))

    # --- boundary glue on the SMALL original-resolution tensor only ---
    x = jnp.transpose(x_nchw, (0, 2, 3, 1)).astype(jnp.bfloat16)      # NHWC bf16
    xp = jnp.pad(x, ((0, 0), (1, 1), (1, 1), (0, 0)))                 # conv padding=1

    # --- fold conv bias + eval-mode BatchNorm; the scale goes into the weights ---
    scale = gamma / jnp.sqrt(running_var + eps)
    shift = (beta + scale * (conv_bias - running_mean)).reshape(1, Cout)
    shift = shift.astype(jnp.float32)

    # --- pre-sum 3x3 weights into 4 phase x 4 tap kernels, fold scale, concat taps ---
    # R[p, a, k] = 1 iff original-resolution tap a of phase p collects 3x3 tap k.
    w_hwio = jnp.transpose(weight, (2, 3, 1, 0)).astype(jnp.float32)  # (3,3,Cin,Cout)
    w_hwio = w_hwio * scale[None, None, None, :]                      # fold BN scale
    R = jnp.array([[[1., 0., 0.], [0., 1., 1.]],
                   [[1., 1., 0.], [0., 0., 1.]]], dtype=jnp.float32)
    wp = jnp.einsum('pak,qbl,klio->pqabio', R, R, w_hwio)             # (2,2,2,2,Cin,Cout)
    wp = wp.reshape(4, 4 * Cin, Cout).astype(jnp.bfloat16)            # K = 4*Cin tap-concat

    kernel = functools.partial(_up_conv_kernel, TH=TH, W=W, Cin=Cin, Cout=Cout)

    out4 = pl.pallas_call(
        kernel,
        out_shape=jax.ShapeDtypeStruct((N, 4, H * W, Cout), jnp.bfloat16),
        grid_spec=pltpu.PrefetchScalarGridSpec(
            num_scalar_prefetch=0,
            grid=(N, H // TH),        # batch is the outer parallel axis (megacore)
            in_specs=[
                # Whole padded original-resolution image per batch element;
                # block index independent of t -> stays resident in VMEM.
                pl.BlockSpec((1, H + 2, W + 2, Cin), lambda b, t: (b, 0, 0, 0)),
                pl.BlockSpec((4, 4 * Cin, Cout), lambda b, t: (0, 0, 0)),
                pl.BlockSpec((1, Cout), lambda b, t: (0, 0)),
            ],
            out_specs=pl.BlockSpec((1, 4, TH * W, Cout), lambda b, t: (b, 0, t, 0)),
        ),
        compiler_params=pltpu.CompilerParams(
            dimension_semantics=("parallel", "parallel"),
            vmem_limit_bytes=vmem_limit),
    )(xp, wp, shift)

    # Single fused output pass (reads bf16, writes f32): interleave the 4 phases
    # AND convert NHWC -> NCHW — the same pass a plain NCHW conv would need anyway.
    out = out4.reshape(N, 2, 2, H, W, Cout)
    out = jnp.transpose(out, (0, 5, 3, 1, 4, 2))          # (N, Cout, H, pi, W, pj)
    return out.reshape(N, Cout, 2 * H, 2 * W).astype(jnp.float32)


def _reference(x_nchw, weight, conv_bias, gamma, beta, mean, var, eps=1e-5):
    """Pure-JAX reference (bf16 operands, f32 accumulation — like the kernel)."""
    u = jnp.repeat(jnp.repeat(x_nchw.astype(jnp.bfloat16), 2, axis=2), 2, axis=3)
    y = jax.lax.conv_general_dilated(
        u, weight.astype(jnp.bfloat16), window_strides=(1, 1),
        padding=((1, 1), (1, 1)),
        dimension_numbers=("NCHW", "OIHW", "NCHW"),
        preferred_element_type=jnp.float32)
    y = y + conv_bias[None, :, None, None]
    y = (y - mean[None, :, None, None]) / jnp.sqrt(var[None, :, None, None] + eps)
    y = y * gamma[None, :, None, None] + beta[None, :, None, None]
    return jnp.maximum(y, 0.0)


if __name__ == "__main__":
    N, Cin, Cout, H, W = 2, 4, 8, 16, 16

    key = jax.random.PRNGKey(0)
    kx, kw, kb, kg, kbe, km, kv = jax.random.split(key, 7)

    x = jax.random.normal(kx, (N, Cin, H, W), dtype=jnp.float32)
    weight = jax.random.normal(kw, (Cout, Cin, 3, 3), dtype=jnp.float32) * 0.1
    conv_bias = jax.random.normal(kb, (Cout,), dtype=jnp.float32) * 0.1
    gamma = 1.0 + 0.1 * jax.random.normal(kg, (Cout,), dtype=jnp.float32)
    beta = 0.1 * jax.random.normal(kbe, (Cout,), dtype=jnp.float32)
    running_mean = 0.1 * jax.random.normal(km, (Cout,), dtype=jnp.float32)
    running_var = jnp.abs(1.0 + 0.1 * jax.random.normal(kv, (Cout,), dtype=jnp.float32))

    out = up_conv_forward(x, weight, conv_bias, gamma, beta,
                          running_mean, running_var)
    out = jax.block_until_ready(out)

    ref = _reference(x, weight, conv_bias, gamma, beta, running_mean, running_var)
    assert out.shape == (N, Cout, 2 * H, 2 * W)
    assert jnp.allclose(out, ref, atol=2e-2, rtol=2e-2), "mismatch vs reference"

    print("KERNEL_OK")
</pallas_src>

<mosaic_0001>
module attributes {stable_mosaic.version = 11 : i64} {
  func.func @_up_conv_kernel(%arg0: i32, %arg1: i32, %arg2: memref<1x18x18x4xbf16, #tpu.memory_space<vmem>>, %arg3: memref<4x16x8xbf16, #tpu.memory_space<vmem>>, %arg4: memref<1x8xf32, #tpu.memory_space<vmem>>, %arg5: memref<1x4x128x8xbf16, #tpu.memory_space<vmem>>) attributes {dimension_semantics = [#tpu.dimension_semantics<parallel>, #tpu.dimension_semantics<parallel>], iteration_bounds = array<i64: 2, 2>, scalar_prefetch = 0 : i64, scratch_operands = 0 : i64, tpu.core_type = #tpu.core_type<tc>, window_params = [{transform_indices = @transform_0, window_bounds = array<i64: 1, 18, 18, 4>}, {pipeline_mode = #tpu.pipeline_mode<synchronous>, transform_indices = @transform_1, window_bounds = array<i64: 4, 16, 8>}, {pipeline_mode = #tpu.pipeline_mode<synchronous>, transform_indices = @transform_2, window_bounds = array<i64: 1, 8>}, {transform_indices = @transform_3, window_bounds = array<i64: 1, 4, 128, 8>}]} {
    %c8_i32 = arith.constant 8 : i32
    %0 = arith.muli %arg1, %c8_i32 : i32
    %1 = tpu.assume_multiple %0, 8 : i32
    %c0_i32 = arith.constant 0 : i32
    %2 = arith.addi %1, %c0_i32 : i32
    %c0 = arith.constant 0 : index
    %3 = arith.index_cast %2 : i32 to index
    %c0_0 = arith.constant 0 : index
    %c0_1 = arith.constant 0 : index
    %4 = vector.load %arg2[%c0, %3, %c0_0, %c0_1] : memref<1x18x18x4xbf16, #tpu.memory_space<vmem>>, vector<1x8x18x4xbf16>
    %5 = vector.shape_cast %4 : vector<1x8x18x4xbf16> to vector<8x18x4xbf16>
    %6 = vector.extract_strided_slice %5 {offsets = [0, 0, 0], sizes = [8, 16, 4], strides = [1, 1, 1]} : vector<8x18x4xbf16> to vector<8x16x4xbf16>
    %7 = vector.shape_cast %6 : vector<8x16x4xbf16> to vector<128x4xbf16>
    %8 = vector.extract_strided_slice %5 {offsets = [0, 1, 0], sizes = [8, 16, 4], strides = [1, 1, 1]} : vector<8x18x4xbf16> to vector<8x16x4xbf16>
    %9 = vector.shape_cast %8 : vector<8x16x4xbf16> to vector<128x4xbf16>
    %10 = vector.extract_strided_slice %5 {offsets = [0, 2, 0], sizes = [8, 16, 4], strides = [1, 1, 1]} : vector<8x18x4xbf16> to vector<8x16x4xbf16>
    %11 = vector.shape_cast %10 : vector<8x16x4xbf16> to vector<128x4xbf16>
    %c1_i32 = arith.constant 1 : i32
    %12 = arith.addi %1, %c1_i32 : i32
    %c0_2 = arith.constant 0 : index
    %13 = arith.index_cast %12 : i32 to index
    %c0_3 = arith.constant 0 : index
    %c0_4 = arith.constant 0 : index
    %14 = vector.load %arg2[%c0_2, %13, %c0_3, %c0_4] : memref<1x18x18x4xbf16, #tpu.memory_space<vmem>>, vector<1x8x18x4xbf16>
    %15 = vector.shape_cast %14 : vector<1x8x18x4xbf16> to vector<8x18x4xbf16>
    %16 = vector.extract_strided_slice %15 {offsets = [0, 0, 0], sizes = [8, 16, 4], strides = [1, 1, 1]} : vector<8x18x4xbf16> to vector<8x16x4xbf16>
    %17 = vector.shape_cast %16 : vector<8x16x4xbf16> to vector<128x4xbf16>
    %18 = vector.extract_strided_slice %15 {offsets = [0, 1, 0], sizes = [8, 16, 4], strides = [1, 1, 1]} : vector<8x18x4xbf16> to vector<8x16x4xbf16>
    %19 = vector.shape_cast %18 : vector<8x16x4xbf16> to vector<128x4xbf16>
    %20 = vector.extract_strided_slice %15 {offsets = [0, 2, 0], sizes = [8, 16, 4], strides = [1, 1, 1]} : vector<8x18x4xbf16> to vector<8x16x4xbf16>
    %21 = vector.shape_cast %20 : vector<8x16x4xbf16> to vector<128x4xbf16>
    %c2_i32 = arith.constant 2 : i32
    %22 = arith.addi %1, %c2_i32 : i32
    %c0_5 = arith.constant 0 : index
    %23 = arith.index_cast %22 : i32 to index
    %c0_6 = arith.constant 0 : index
    %c0_7 = arith.constant 0 : index
    %24 = vector.load %arg2[%c0_5, %23, %c0_6, %c0_7] : memref<1x18x18x4xbf16, #tpu.memory_space<vmem>>, vector<1x8x18x4xbf16>
    %25 = vector.shape_cast %24 : vector<1x8x18x4xbf16> to vector<8x18x4xbf16>
    %26 = vector.extract_strided_slice %25 {offsets = [0, 0, 0], sizes = [8, 16, 4], strides = [1, 1, 1]} : vector<8x18x4xbf16> to vector<8x16x4xbf16>
    %27 = vector.shape_cast %26 : vector<8x16x4xbf16> to vector<128x4xbf16>
    %28 = vector.extract_strided_slice %25 {offsets = [0, 1, 0], sizes = [8, 16, 4], strides = [1, 1, 1]} : vector<8x18x4xbf16> to vector<8x16x4xbf16>
    %29 = vector.shape_cast %28 : vector<8x16x4xbf16> to vector<128x4xbf16>
    %30 = vector.extract_strided_slice %25 {offsets = [0, 2, 0], sizes = [8, 16, 4], strides = [1, 1, 1]} : vector<8x18x4xbf16> to vector<8x16x4xbf16>
    %31 = vector.shape_cast %30 : vector<8x16x4xbf16> to vector<128x4xbf16>
    %c0_8 = arith.constant 0 : index
    %c0_9 = arith.constant 0 : index
    %32 = vector.load %arg4[%c0_8, %c0_9] : memref<1x8xf32, #tpu.memory_space<vmem>>, vector<1x8xf32>
    %33 = vector.shape_cast %32 : vector<1x8xf32> to vector<1x8xf32>
    %34 = vector.broadcast %33 : vector<1x8xf32> to vector<128x8xf32>
    %35 = tpu.concatenate %7, %9, %17, %19 in 1 : vector<128x4xbf16>, vector<128x4xbf16>, vector<128x4xbf16>, vector<128x4xbf16> -> vector<128x16xbf16>
    %c0_10 = arith.constant 0 : index
    %c0_11 = arith.constant 0 : index
    %c0_12 = arith.constant 0 : index
    %36 = vector.load %arg3[%c0_10, %c0_11, %c0_12] : memref<4x16x8xbf16, #tpu.memory_space<vmem>>, vector<1x16x8xbf16>
    %37 = vector.shape_cast %36 : vector<1x16x8xbf16> to vector<16x8xbf16>
    %cst = arith.constant dense<0.000000e+00> : vector<128x8xf32>
    %38 = tpu.matmul %35, %37, %cst {dimension_numbers = #tpu.dot_dimension_numbers<[1], [0], [0], [1], [0, 0, 1, 1], [], []>} : vector<128x16xbf16>, vector<16x8xbf16>, vector<128x8xf32> -> vector<128x8xf32>
    %39 = arith.addf %38, %34 : vector<128x8xf32>
    %cst_13 = arith.constant 0.000000e+00 : f32
    %40 = vector.broadcast %cst_13 : f32 to vector<128x8xf32>
    %41 = arith.maximumf %39, %40 : vector<128x8xf32>
    %42 = arith.truncf %41 : vector<128x8xf32> to vector<128x8xbf16>
    %c0_14 = arith.constant 0 : index
    %c0_15 = arith.constant 0 : index
    %c0_16 = arith.constant 0 : index
    %c0_17 = arith.constant 0 : index
    %43 = vector.load %arg5[%c0_14, %c0_15, %c0_16, %c0_17] : memref<1x4x128x8xbf16, #tpu.memory_space<vmem>>, vector<1x1x128x8xbf16>
    %44 = vector.shape_cast %43 : vector<1x1x128x8xbf16> to vector<128x8xbf16>
    %45 = vector.shape_cast %42 : vector<128x8xbf16> to vector<1x1x128x8xbf16>
    tpu.vector_store %arg5[%c0_14, %c0_15, %c0_16, %c0_17], %45 {strides = array<i32>} : memref<1x4x128x8xbf16, #tpu.memory_space<vmem>>, vector<1x1x128x8xbf16>,
    %46 = tpu.concatenate %9, %11, %19, %21 in 1 : vector<128x4xbf16>, vector<128x4xbf16>, vector<128x4xbf16>, vector<128x4xbf16> -> vector<128x16xbf16>
    %c1 = arith.constant 1 : index
    %c0_18 = arith.constant 0 : index
    %c0_19 = arith.constant 0 : index
    %47 = vector.load %arg3[%c1, %c0_18, %c0_19] : memref<4x16x8xbf16, #tpu.memory_space<vmem>>, vector<1x16x8xbf16>
    %48 = vector.shape_cast %47 : vector<1x16x8xbf16> to vector<16x8xbf16>
    %cst_20 = arith.constant dense<0.000000e+00> : vector<128x8xf32>
    %49 = tpu.matmul %46, %48, %cst_20 {dimension_numbers = #tpu.dot_dimension_numbers<[1], [0], [0], [1], [0, 0, 1, 1], [], []>} : vector<128x16xbf16>, vector<16x8xbf16>, vector<128x8xf32> -> vector<128x8xf32>
    %50 = arith.addf %49, %34 : vector<128x8xf32>
    %cst_21 = arith.constant 0.000000e+00 : f32
    %51 = vector.broadcast %cst_21 : f32 to vector<128x8xf32>
    %52 = arith.maximumf %50, %51 : vector<128x8xf32>
    %53 = arith.truncf %52 : vector<128x8xf32> to vector<128x8xbf16>
    %c0_22 = arith.constant 0 : index
    %c1_23 = arith.constant 1 : index
    %c0_24 = arith.constant 0 : index
    %c0_25 = arith.constant 0 : index
    %54 = vector.load %arg5[%c0_22, %c1_23, %c0_24, %c0_25] : memref<1x4x128x8xbf16, #tpu.memory_space<vmem>>, vector<1x1x128x8xbf16>
    %55 = vector.shape_cast %54 : vector<1x1x128x8xbf16> to vector<128x8xbf16>
    %56 = vector.shape_cast %53 : vector<128x8xbf16> to vector<1x1x128x8xbf16>
    tpu.vector_store %arg5[%c0_22, %c1_23, %c0_24, %c0_25], %56 {strides = array<i32>} : memref<1x4x128x8xbf16, #tpu.memory_space<vmem>>, vector<1x1x128x8xbf16>,
    %57 = tpu.concatenate %17, %19, %27, %29 in 1 : vector<128x4xbf16>, vector<128x4xbf16>, vector<128x4xbf16>, vector<128x4xbf16> -> vector<128x16xbf16>
    %c2 = arith.constant 2 : index
    %c0_26 = arith.constant 0 : index
    %c0_27 = arith.constant 0 : index
    %58 = vector.load %arg3[%c2, %c0_26, %c0_27] : memref<4x16x8xbf16, #tpu.memory_space<vmem>>, vector<1x16x8xbf16>
    %59 = vector.shape_cast %58 : vector<1x16x8xbf16> to vector<16x8xbf16>
    %cst_28 = arith.constant dense<0.000000e+00> : vector<128x8xf32>
    %60 = tpu.matmul %57, %59, %cst_28 {dimension_numbers = #tpu.dot_dimension_numbers<[1], [0], [0], [1], [0, 0, 1, 1], [], []>} : vector<128x16xbf16>, vector<16x8xbf16>, vector<128x8xf32> -> vector<128x8xf32>
    %61 = arith.addf %60, %34 : vector<128x8xf32>
    %cst_29 = arith.constant 0.000000e+00 : f32
    %62 = vector.broadcast %cst_29 : f32 to vector<128x8xf32>
    %63 = arith.maximumf %61, %62 : vector<128x8xf32>
    %64 = arith.truncf %63 : vector<128x8xf32> to vector<128x8xbf16>
    %c0_30 = arith.constant 0 : index
    %c2_31 = arith.constant 2 : index
    %c0_32 = arith.constant 0 : index
    %c0_33 = arith.constant 0 : index
    %65 = vector.load %arg5[%c0_30, %c2_31, %c0_32, %c0_33] : memref<1x4x128x8xbf16, #tpu.memory_space<vmem>>, vector<1x1x128x8xbf16>
    %66 = vector.shape_cast %65 : vector<1x1x128x8xbf16> to vector<128x8xbf16>
    %67 = vector.shape_cast %64 : vector<128x8xbf16> to vector<1x1x128x8xbf16>
    tpu.vector_store %arg5[%c0_30, %c2_31, %c0_32, %c0_33], %67 {strides = array<i32>} : memref<1x4x128x8xbf16, #tpu.memory_space<vmem>>, vector<1x1x128x8xbf16>,
    %68 = tpu.concatenate %19, %21, %29, %31 in 1 : vector<128x4xbf16>, vector<128x4xbf16>, vector<128x4xbf16>, vector<128x4xbf16> -> vector<128x16xbf16>
    %c3 = arith.constant 3 : index
    %c0_34 = arith.constant 0 : index
    %c0_35 = arith.constant 0 : index
    %69 = vector.load %arg3[%c3, %c0_34, %c0_35] : memref<4x16x8xbf16, #tpu.memory_space<vmem>>, vector<1x16x8xbf16>
    %70 = vector.shape_cast %69 : vector<1x16x8xbf16> to vector<16x8xbf16>
    %cst_36 = arith.constant dense<0.000000e+00> : vector<128x8xf32>
    %71 = tpu.matmul %68, %70, %cst_36 {dimension_numbers = #tpu.dot_dimension_numbers<[1], [0], [0], [1], [0, 0, 1, 1], [], []>} : vector<128x16xbf16>, vector<16x8xbf16>, vector<128x8xf32> -> vector<128x8xf32>
    %72 = arith.addf %71, %34 : vector<128x8xf32>
    %cst_37 = arith.constant 0.000000e+00 : f32
    %73 = vector.broadcast %cst_37 : f32 to vector<128x8xf32>
    %74 = arith.maximumf %72, %73 : vector<128x8xf32>
    %75 = arith.truncf %74 : vector<128x8xf32> to vector<128x8xbf16>
    %c0_38 = arith.constant 0 : index
    %c3_39 = arith.constant 3 : index
    %c0_40 = arith.constant 0 : index
    %c0_41 = arith.constant 0 : index
    %76 = vector.load %arg5[%c0_38, %c3_39, %c0_40, %c0_41] : memref<1x4x128x8xbf16, #tpu.memory_space<vmem>>, vector<1x1x128x8xbf16>
    %77 = vector.shape_cast %76 : vector<1x1x128x8xbf16> to vector<128x8xbf16>
    %78 = vector.shape_cast %75 : vector<128x8xbf16> to vector<1x1x128x8xbf16>
    tpu.vector_store %arg5[%c0_38, %c3_39, %c0_40, %c0_41], %78 {strides = array<i32>} : memref<1x4x128x8xbf16, #tpu.memory_space<vmem>>, vector<1x1x128x8xbf16>,
    return
  }
  func.func @transform_0(%arg0: i32, %arg1: i32) -> (i32, i32, i32, i32) {
    %c0_i32 = arith.constant 0 : i32
    %c0_i32_0 = arith.constant 0 : i32
    %c0_i32_1 = arith.constant 0 : i32
    %c0_i32_2 = arith.constant 0 : i32
    return %arg0, %c0_i32, %c0_i32_0, %c0_i32_1 : i32, i32, i32, i32
  }
  func.func @transform_1(%arg0: i32, %arg1: i32) -> (i32, i32, i32) {
    %c0_i32 = arith.constant 0 : i32
    %c0_i32_0 = arith.constant 0 : i32
    %c0_i32_1 = arith.constant 0 : i32
    %c0_i32_2 = arith.constant 0 : i32
    return %c0_i32, %c0_i32_0, %c0_i32_1 : i32, i32, i32
  }
  func.func @transform_2(%arg0: i32, %arg1: i32) -> (i32, i32) {
    %c0_i32 = arith.constant 0 : i32
    %c0_i32_0 = arith.constant 0 : i32
    %c0_i32_1 = arith.constant 0 : i32
    return %c0_i32, %c0_i32_0 : i32, i32
  }
  func.func @transform_3(%arg0: i32, %arg1: i32) -> (i32, i32, i32, i32) {
    %c0_i32 = arith.constant 0 : i32
    %c0_i32_0 = arith.constant 0 : i32
    %c0_i32_1 = arith.constant 0 : i32
    return %arg0, %c0_i32, %arg1, %c0_i32_0 : i32, i32, i32, i32
  }
}

</mosaic_0001>

<llo_original>
// kernel: tpu_custom_call.1
$region0: #{tpu_custom_call.1}
  #allocation0 [shape = 'u32[]', space=smem, size = 0x4, offset = 0x4, fixed_abs, tag = 'smem constant byte address 0x4 - core index']
  #allocation1 [shape = 'u32[144,128]{1,0:T(1,128)}', space=vmem, size = 0x12000, scoped, tag = 'internal scratch']
  %s0 = inlined_call_operand.vmem [shape: bf16[2,18,18,4], index: 0, kind: input, shape index: {}]
  %s1 = inlined_call_operand.vmem [shape: bf16[4,16,8], index: 1, kind: input, shape index: {}]
  %s2 = inlined_call_operand.vmem [shape: f32[1,8], index: 2, kind: input, shape index: {}]
  %s3 = inlined_call_operand.vmem [shape: bf16[2,4,256,8], index: 3, kind: output, shape index: {}]
  %s4 = sld [smem:[#allocation0]]
  $region82: #{tpu_custom_call.1} parent=0
    _
  %s6 = ssub.s32 1, %s4
  %s7 = scalar_select 0, %s6, %s4
  $region1: #{tpu_custom_call.1} parent=0
    #allocation2 [shape = 'u8[262144]{0}', space=vmem, size = 0x40000, scoped, tag = 'output window, operand 0']
    loop: start=0, step=1, limit=6
    $region2: #{tpu_custom_call.1} parent=1 // loop_pre_header
      _
    $region3: #{tpu_custom_call.1} parent=1 // loop_header
      %s9 = sphi 0, %s13
      %p10 = scmp.ge.s32.totalorder %s9, 6
      %s16 = sphi 0, %s28
      %s17 = sphi 0, %s24
      %s18 = sphi 0, %s16
      %s19 = sphi 0, %s17
      %s20 = sphi 0, %s18
      %s21 = sphi 0, %s19
      %s31 = sphi 0, %s33
      %s34 = sphi 0, %s31
      %s35 = sphi 0, %s34
      %s51 = sphi 0, %s35
      %s55 = sphi 0, %s55
      %s57 = sphi 0, %s55
      %s58 = sphi 0, %s57
      %s72 = sphi 0, %s58
      %s76 = sphi 0, %s76
      %s78 = sphi 0, %s76
      %s79 = sphi 0, %s78
      %s93 = sphi 0, %s79
      %s101 = sphi 0, %s103
      %s104 = sphi 0, %s101
      %s105 = sphi 0, %s104
      %s121 = sphi 0, %s105
    $region4: #{tpu_custom_call.1} parent=1 // loop_header_branch
      %12 = sbr.rel (%p10) target = $region8
    $region5: #{tpu_custom_call.1} parent=1 // loop_body
      %s14 = ssub.s32 %s9, 1
      %s15 = ssub.s32 %s9, 2
      %s22 = sadd.s32 1, %s17
      %p23 = scmp.ge.s32.totalorder %s22, 2
      %s24 = scalar_select %p23, 0, %s22
      %s25 = sadd.s32 1, %s16
      %s26 = scalar_select %p23, %s25, %s16
      %p27 = scmp.ge.s32.totalorder %s26, 2
      %s28 = scalar_select %p27, 0, %s26
      %s29 = ssub.s32 %s16, %s28
      %p30 = scmp.eq.s32.totalorder %s29, 0
      %s32 = sadd.s32 %s31, 1
      %s33 = scalar_select %p30, %s31, %s32
      %p36 = pneg %p30
      %p37 = scmp.eq.s32.totalorder %s9, 3
      %p38 = por %p36, %p37
      %p39 = scmp.ne.s32.totalorder %s31, %s34
      %p40 = scmp.eq.s32.totalorder %s9, 0
      %p41 = por %p39, %p40
      %p42 = scmp.ne.s32.totalorder %s31, %s34
      %p43 = scmp.eq.s32.totalorder %s14, 3
      %p44 = por %p42, %p43
      %p45 = scmp.ne.s32.totalorder %s34, %s35
      %p46 = scmp.eq.s32.totalorder %s14, 0
      %p47 = por %p45, %p46
      %p48 = scmp.ne.s32.totalorder %s34, %s35
      %p49 = scmp.eq.s32.totalorder %s15, 3
      %p50 = por %p48, %p49
      %p52 = scmp.ne.s32.totalorder %s35, %s51
      %p53 = scmp.eq.s32.totalorder %s15, 0
      %p54 = por %p52, %p53
      %s56 = sadd.s32 %s55, 1
      %p59 = scmp.eq.s32.totalorder %s9, 3
      %p60 = scmp.ne.s32.totalorder %s55, %s57
      %p61 = scmp.eq.s32.totalorder %s9, 0
      %p62 = por %p60, %p61
      %p63 = scmp.ne.s32.totalorder %s55, %s57
      %p64 = scmp.eq.s32.totalorder %s14, 3
      %p65 = por %p63, %p64
      %p66 = scmp.ne.s32.totalorder %s57, %s58
      %p67 = scmp.eq.s32.totalorder %s14, 0
      %p68 = por %p66, %p67
      %p69 = scmp.ne.s32.totalorder %s57, %s58
      %p70 = scmp.eq.s32.totalorder %s15, 3
      %p71 = por %p69, %p70
      %p73 = scmp.ne.s32.totalorder %s58, %s72
      %p74 = scmp.eq.s32.totalorder %s15, 0
      %p75 = por %p73, %p74
      %s77 = sadd.s32 %s76, 1
      %p80 = scmp.eq.s32.totalorder %s9, 3
      %p81 = scmp.ne.s32.totalorder %s76, %s78
      %p82 = scmp.eq.s32.totalorder %s9, 0
      %p83 = por %p81, %p82
      %p84 = scmp.ne.s32.totalorder %s76, %s78
      %p85 = scmp.eq.s32.totalorder %s14, 3
      %p86 = por %p84, %p85
      %p87 = scmp.ne.s32.totalorder %s78, %s79
      %p88 = scmp.eq.s32.totalorder %s14, 0
      %p89 = por %p87, %p88
      %p90 = scmp.ne.s32.totalorder %s78, %s79
      %p91 = scmp.eq.s32.totalorder %s15, 3
      %p92 = por %p90, %p91
      %p94 = scmp.ne.s32.totalorder %s79, %s93
      %p95 = scmp.eq.s32.totalorder %s15, 0
      %p96 = por %p94, %p95
      %s97 = ssub.s32 %s16, %s28
      %s98 = ssub.s32 %s17, %s24
      %s99 = sor.u32 %s97, %s98
      %p100 = scmp.eq.s32.totalorder %s99, 0
      %s102 = sadd.s32 %s101, 1
      %s103 = scalar_select %p100, %s101, %s102
      %p106 = pneg %p100
      %p107 = scmp.eq.s32.totalorder %s9, 3
      %p108 = por %p106, %p107
      %p109 = scmp.ne.s32.totalorder %s101, %s104
      %p110 = scmp.eq.s32.totalorder %s9, 0
      %p111 = por %p109, %p110
      %p112 = scmp.ne.s32.totalorder %s101, %s104
      %p113 = scmp.eq.s32.totalorder %s14, 3
      %p114 = por %p112, %p113
      %p115 = scmp.ne.s32.totalorder %s104, %s105
      %p116 = scmp.eq.s32.totalorder %s14, 0
      %p117 = por %p115, %p116
      %p118 = scmp.ne.s32.totalorder %s104, %s105
      %p119 = scmp.eq.s32.totalorder %s15, 3
      %p120 = por %p118, %p119
      %p122 = scmp.ne.s32.totalorder %s105, %s121
      %p123 = scmp.eq.s32.totalorder %s15, 0
      %p124 = por %p122, %p123
      %p125 = scmp.le.s32.totalorder 1, %s9
      %p126 = scmp.lt.s32.totalorder %s9, 5
      %p127 = pnand %p125, %p126
      %p128 = pneg %p127
      // Predicated region
      $region9: #{tpu_custom_call.1} parent=5 // pred_check
        _
      $region10: #{tpu_custom_call.1} parent=5 // pred_check_branch
        %130 = sbr.rel (%p127) target = $region12
      $region11: #{tpu_custom_call.1} parent=5 // pred_region
        %s131 = ssub.s32 %s9, 1
        // Predicated region
        $region13: #{tpu_custom_call.1} parent=11 // pred_check
          %p132 = pneg %p68
        $region14: #{tpu_custom_call.1} parent=11 // pred_check_branch
          %134 = sbr.rel (%p132) target = $region16
        $region15: #{tpu_custom_call.1} parent=11 // pred_region
          _
        $region16: #{tpu_custom_call.1} parent=11 // pred_fallthru
          _
        // Predicated region
        $region17: #{tpu_custom_call.1} parent=11 // pred_check
          %p135 = pneg %p89
        $region18: #{tpu_custom_call.1} parent=11 // pred_check_branch
          %137 = sbr.rel (%p135) target = $region20
        $region19: #{tpu_custom_call.1} parent=11 // pred_region
          _
        $region20: #{tpu_custom_call.1} parent=11 // pred_fallthru
          _
      $region12: #{tpu_custom_call.1} parent=5 // pred_fallthru
        _
      %p138 = scmp.lt.s32.totalorder %s9, 4
      // Predicated region
      $region21: #{tpu_custom_call.1} parent=5 // pred_check
        %p139 = pneg %p138
      $region22: #{tpu_custom_call.1} parent=5 // pred_check_branch
        %141 = sbr.rel (%p139) target = $region24
      $region23: #{tpu_custom_call.1} parent=5 // pred_region
        // Predicated region
        $region25: #{tpu_custom_call.1} parent=23 // pred_check
          %p142 = pneg %p41
        $region26: #{tpu_custom_call.1} parent=23 // pred_check_branch
          %144 = sbr.rel (%p142) target = $region28
        $region27: #{tpu_custom_call.1} parent=23 // pred_region
          %p145 = scmp.lt.s32.totalorder %s16, 1
          %s146 = scalar_select %p145, %s16, 1
          %s147 = smul.addr %s146, 54
          %s148 = smul.addr %s147, 4
          %s149 = scalar_lea.vmem %s0, %s148
        $region28: #{tpu_custom_call.1} parent=23 // pred_fallthru
          _
      $region24: #{tpu_custom_call.1} parent=5 // pred_fallthru
        _
      %p150 = scmp.le.s32.totalorder 1, %s9
      %p151 = scmp.lt.s32.totalorder %s9, 5
      %p152 = pnand %p150, %p151
      %p153 = pneg %p152
      // Predicated region
      $region29: #{tpu_custom_call.1} parent=5 // pred_check
        _
      $region30: #{tpu_custom_call.1} parent=5 // pred_check_branch
        %155 = sbr.rel (%p152) target = $region32
      $region31: #{tpu_custom_call.1} parent=5 // pred_region
        %s156 = ssub.s32 %s9, 1
        %p157 = scmp.lt.s32.totalorder %s18, 1
        %s158 = scalar_select %p157, %s18, 1
        %s159 = smul.addr %s158, 54
        %s160 = smul.addr %s159, 4
        %s161 = scalar_lea.vmem %s0, %s160
        %p162 = pneg %p47
        %p163 = pneg %p44
        %p164 = pneg %p68
        %p165 = pneg %p65
        %p166 = pneg %p89
        %p167 = pneg %p86
        %p168 = pneg %p117
        %p169 = pneg %p114
        %s170 = sand.u32 %s104, 1
        %s171 = sand.u32 %s104, 1
        %s172 = smul.addr %s171, 256
        %s173 = scalar_lea.vmem [#allocation2], %s172
        %p174 = scmp.lt.s32.totalorder %s18, 1
        %s175 = scalar_select %p174, %s18, 1
        %s176 = smul.addr %s175, 54
        %s177 = smul.addr %s176, 4
        %s178 = scalar_lea.vmem %s0, %s177
        %s179 = smul.u32 16, %s19
        %s181 = smul.u32 %s19, 8
        %s182 = smul.u32 %s181, 3
        %s183 = smul.addr %s182, 4
        %s184 = scalar_lea.vmem %s178, %s183
        %v185 = vld [vmem:[%s184] sm:$0xf]
        %v186 = vld [vmem:[%s184 + $0x4] sm:$0xf]
        %v187 = vld [vmem:[%s184 + $0x8] sm:$0x1]
        %v188 = vld [vmem:[%s184 + $0xc] sm:$0xf]
        %v189 = vld [vmem:[%s184 + $0x10] sm:$0xf]
        %v190 = vld [vmem:[%s184 + $0x14] sm:$0x1]
        %v191 = vld [vmem:[%s184 + $0x18] sm:$0xf]
        %v192 = vld [vmem:[%s184 + $0x1c] sm:$0xf]
        %v193 = vld [vmem:[%s184 + $0x20] sm:$0x1]
        %v194 = vld [vmem:[%s184 + $0x24] sm:$0xf]
        %v195 = vld [vmem:[%s184 + $0x28] sm:$0xf]
        %v196 = vld [vmem:[%s184 + $0x2c] sm:$0x1]
        %v197 = vld [vmem:[%s184 + $0x30] sm:$0xf]
        %v198 = vld [vmem:[%s184 + $0x34] sm:$0xf]
        %v199 = vld [vmem:[%s184 + $0x38] sm:$0x1]
        %v200 = vld [vmem:[%s184 + $0x3c] sm:$0xf]
        %v201 = vld [vmem:[%s184 + $0x40] sm:$0xf]
        %v202 = vld [vmem:[%s184 + $0x44] sm:$0x1]
        %v203 = vld [vmem:[%s184 + $0x48] sm:$0xf]
        %v204 = vld [vmem:[%s184 + $0x4c] sm:$0xf]
        %v205 = vld [vmem:[%s184 + $0x50] sm:$0x1]
        %v206 = vld [vmem:[%s184 + $0x54] sm:$0xf]
        %v207 = vld [vmem:[%s184 + $0x58] sm:$0xf]
        %v208 = vld [vmem:[%s184 + $0x5c] sm:$0x1]
        %vm209 = vsmask.f32 3328
        %vm210 = vsmask.f32 7440
        %vm211 = vmor %vm209, %vm210
        %v213 = vshrl.u32 %v185, 16
        %v215 = vrot.slane %v213, 4
        %v216 = vshll.u32 %v185, 16
        %v218 = vrot.slane %v216, 5
        %v219 = vor.u32 %v215, %v218
        %v220 = vrot.slane %v219, 4
        %v222 = vshll.u32 %v186, 16
        %v224 = vrot.slane %v222, 5
        %v225 = vsel %vm211, %v220, %v224
        %v226 = vshrl.u32 %v186, 16
        %v228 = vrot.slane %v226, 4
        %v229 = vor.u32 %v228, %v224
        %v230 = vrot.slane %v229, 4
        %v232 = vshll.u32 %v187, 16
        %v234 = vrot.slane %v232, 5
        %v235 = vsel %vm211, %v230, %v234
        %v237 = vshrl.u32 %v188, 16
        %v239 = vrot.slane %v237, 4
        %v240 = vshll.u32 %v188, 16
        %v242 = vrot.slane %v240, 5
        %v243 = vor.u32 %v239, %v242
        %v244 = vrot.slane %v243, 4
        %v246 = vshll.u32 %v189, 16
        %v248 = vrot.slane %v246, 5
        %v249 = vsel %vm211, %v244, %v248
        %v250 = vshrl.u32 %v189, 16
        %v252 = vrot.slane %v250, 4
        %v253 = vor.u32 %v252, %v248
        %v254 = vrot.slane %v253, 4
        %v256 = vshll.u32 %v190, 16
        %v258 = vrot.slane %v256, 5
        %v259 = vsel %vm211, %v254, %v258
        %v261 = vshrl.u32 %v191, 16
        %v263 = vrot.slane %v261, 4
        %v264 = vshll.u32 %v191, 16
        %v266 = vrot.slane %v264, 5
        %v267 = vor.u32 %v263, %v266
        %v268 = vrot.slane %v267, 4
        %v270 = vshll.u32 %v192, 16
        %v272 = vrot.slane %v270, 5
        %v273 = vsel %vm211, %v268, %v272
        %v274 = vshrl.u32 %v192, 16
        %v276 = vrot.slane %v274, 4
        %v277 = vor.u32 %v276, %v272
        %v278 = vrot.slane %v277, 4
        %v280 = vshll.u32 %v193, 16
        %v282 = vrot.slane %v280, 5
        %v283 = vsel %vm211, %v278, %v282
        %v285 = vshrl.u32 %v194, 16
        %v287 = vrot.slane %v285, 4
        %v288 = vshll.u32 %v194, 16
        %v290 = vrot.slane %v288, 5
        %v291 = vor.u32 %v287, %v290
        %v292 = vrot.slane %v291, 4
        %v294 = vshll.u32 %v195, 16
        %v296 = vrot.slane %v294, 5
        %v297 = vsel %vm211, %v292, %v296
        %v298 = vshrl.u32 %v195, 16
        %v300 = vrot.slane %v298, 4
        %v301 = vor.u32 %v300, %v296
        %v302 = vrot.slane %v301, 4
        %v304 = vshll.u32 %v196, 16
        %v306 = vrot.slane %v304, 5
        %v307 = vsel %vm211, %v302, %v306
        %v309 = vshrl.u32 %v197, 16
        %v311 = vrot.slane %v309, 4
        %v312 = vshll.u32 %v197, 16
        %v314 = vrot.slane %v312, 5
        %v315 = vor.u32 %v311, %v314
        %v316 = vrot.slane %v315, 4
        %v318 = vshll.u32 %v198, 16
        %v320 = vrot.slane %v318, 5
        %v321 = vsel %vm211, %v316, %v320
        %v322 = vshrl.u32 %v198, 16
        %v324 = vrot.slane %v322, 4
        %v325 = vor.u32 %v324, %v320
        %v326 = vrot.slane %v325, 4
        %v328 = vshll.u32 %v199, 16
        %v330 = vrot.slane %v328, 5
        %v331 = vsel %vm211, %v326, %v330
        %v333 = vshrl.u32 %v200, 16
        %v335 = vrot.slane %v333, 4
        %v336 = vshll.u32 %v200, 16
        %v338 = vrot.slane %v336, 5
        %v339 = vor.u32 %v335, %v338
        %v340 = vrot.slane %v339, 4
        %v342 = vshll.u32 %v201, 16
        %v344 = vrot.slane %v342, 5
        %v345 = vsel %vm211, %v340, %v344
        %v346 = vshrl.u32 %v201, 16
        %v348 = vrot.slane %v346, 4
        %v349 = vor.u32 %v348, %v344
        %v350 = vrot.slane %v349, 4
        %v352 = vshll.u32 %v202, 16
        %v354 = vrot.slane %v352, 5
        %v355 = vsel %vm211, %v350, %v354
        %v357 = vshrl.u32 %v203, 16
        %v359 = vrot.slane %v357, 4
        %v360 = vshll.u32 %v203, 16
        %v362 = vrot.slane %v360, 5
        %v363 = vor.u32 %v359, %v362
        %v364 = vrot.slane %v363, 4
        %v366 = vshll.u32 %v204, 16
        %v368 = vrot.slane %v366, 5
        %v369 = vsel %vm211, %v364, %v368
        %v370 = vshrl.u32 %v204, 16
        %v372 = vrot.slane %v370, 4
        %v373 = vor.u32 %v372, %v368
        %v374 = vrot.slane %v373, 4
        %v376 = vshll.u32 %v205, 16
        %v378 = vrot.slane %v376, 5
        %v379 = vsel %vm211, %v374, %v378
        %v381 = vshrl.u32 %v206, 16
        %v383 = vrot.slane %v381, 4
        %v384 = vshll.u32 %v206, 16
        %v386 = vrot.slane %v384, 5
        %v387 = vor.u32 %v383, %v386
        %v388 = vrot.slane %v387, 4
        %v390 = vshll.u32 %v207, 16
        %v392 = vrot.slane %v390, 5
        %v393 = vsel %vm211, %v388, %v392
        %v394 = vshrl.u32 %v207, 16
        %v396 = vrot.slane %v394, 4
        %v397 = vor.u32 %v396, %v392
        %v398 = vrot.slane %v397, 4
        %v400 = vshll.u32 %v208, 16
        %v402 = vrot.slane %v400, 5
        %v403 = vsel %vm211, %v398, %v402
        %vm428 = vcmask 1042432
        %vm429 = vcmask 1046532
        %vm430 = vmor %vm428, %vm429
        %v431 = vrot.slane %v185, 5
        %v432 = vrot.slane %v431, 4
        %v433 = vrot.slane %v186, 5
        %v434 = vsel %vm430, %v432, %v433
        %v435 = vrot.slane %v433, 4
        %v436 = vrot.slane %v187, 5
        %v437 = vsel %vm430, %v435, %v436
        %v438 = vrot.slane %v188, 5
        %v439 = vrot.slane %v438, 4
        %v440 = vrot.slane %v189, 5
        %v441 = vsel %vm430, %v439, %v440
        %v442 = vrot.slane %v440, 4
        %v443 = vrot.slane %v190, 5
        %v444 = vsel %vm430, %v442, %v443
        %v445 = vrot.slane %v191, 5
        %v446 = vrot.slane %v445, 4
        %v447 = vrot.slane %v192, 5
        %v448 = vsel %vm430, %v446, %v447
        %v449 = vrot.slane %v447, 4
        %v450 = vrot.slane %v193, 5
        %v451 = vsel %vm430, %v449, %v450
        %v452 = vrot.slane %v194, 5
        %v453 = vrot.slane %v452, 4
        %v454 = vrot.slane %v195, 5
        %v455 = vsel %vm430, %v453, %v454
        %v456 = vrot.slane %v454, 4
        %v457 = vrot.slane %v196, 5
        %v458 = vsel %vm430, %v456, %v457
        %v459 = vrot.slane %v197, 5
        %v460 = vrot.slane %v459, 4
        %v461 = vrot.slane %v198, 5
        %v462 = vsel %vm430, %v460, %v461
        %v463 = vrot.slane %v461, 4
        %v464 = vrot.slane %v199, 5
        %v465 = vsel %vm430, %v463, %v464
        %v466 = vrot.slane %v200, 5
        %v467 = vrot.slane %v466, 4
        %v468 = vrot.slane %v201, 5
        %v469 = vsel %vm430, %v467, %v468
        %v470 = vrot.slane %v468, 4
        %v471 = vrot.slane %v202, 5
        %v472 = vsel %vm430, %v470, %v471
        %v473 = vrot.slane %v203, 5
        %v474 = vrot.slane %v473, 4
        %v475 = vrot.slane %v204, 5
        %v476 = vsel %vm430, %v474, %v475
        %v477 = vrot.slane %v475, 4
        %v478 = vrot.slane %v205, 5
        %v479 = vsel %vm430, %v477, %v478
        %v480 = vrot.slane %v206, 5
        %v481 = vrot.slane %v480, 4
        %v482 = vrot.slane %v207, 5
        %v483 = vsel %vm430, %v481, %v482
        %v484 = vrot.slane %v482, 4
        %v485 = vrot.slane %v208, 5
        %v486 = vsel %vm430, %v484, %v485
        %s487 = sadd.s32 %s181, 1
        %s488 = smul.u32 %s487, 3
        %s489 = smul.addr %s488, 4
        %s490 = scalar_lea.vmem %s178, %s489
        %v491 = vld [vmem:[%s490] sm:$0xf]
        %v492 = vld [vmem:[%s490 + $0x4] sm:$0xf]
        %v493 = vld [vmem:[%s490 + $0x8] sm:$0x1]
        %v494 = vld [vmem:[%s490 + $0xc] sm:$0xf]
        %v495 = vld [vmem:[%s490 + $0x10] sm:$0xf]
        %v496 = vld [vmem:[%s490 + $0x14] sm:$0x1]
        %v497 = vld [vmem:[%s490 + $0x18] sm:$0xf]
        %v498 = vld [vmem:[%s490 + $0x1c] sm:$0xf]
        %v499 = vld [vmem:[%s490 + $0x20] sm:$0x1]
        %v500 = vld [vmem:[%s490 + $0x24] sm:$0xf]
        %v501 = vld [vmem:[%s490 + $0x28] sm:$0xf]
        %v502 = vld [vmem:[%s490 + $0x2c] sm:$0x1]
        %v503 = vld [vmem:[%s490 + $0x30] sm:$0xf]
        %v504 = vld [vmem:[%s490 + $0x34] sm:$0xf]
        %v505 = vld [vmem:[%s490 + $0x38] sm:$0x1]
        %v506 = vld [vmem:[%s490 + $0x3c] sm:$0xf]
        %v507 = vld [vmem:[%s490 + $0x40] sm:$0xf]
        %v508 = vld [vmem:[%s490 + $0x44] sm:$0x1]
        %v509 = vld [vmem:[%s490 + $0x48] sm:$0xf]
        %v510 = vld [vmem:[%s490 + $0x4c] sm:$0xf]
        %v511 = vld [vmem:[%s490 + $0x50] sm:$0x1]
        %v512 = vld [vmem:[%s490 + $0x54] sm:$0xf]
        %v513 = vld [vmem:[%s490 + $0x58] sm:$0xf]
        %v514 = vld [vmem:[%s490 + $0x5c] sm:$0x1]
        %v516 = vshrl.u32 %v491, 16
        %v518 = vrot.slane %v516, 4
        %v519 = vshll.u32 %v491, 16
        %v521 = vrot.slane %v519, 5
        %v522 = vor.u32 %v518, %v521
        %v523 = vrot.slane %v522, 4
        %v525 = vshll.u32 %v492, 16
        %v527 = vrot.slane %v525, 5
        %v528 = vsel %vm211, %v523, %v527
        %v529 = vshrl.u32 %v492, 16
        %v531 = vrot.slane %v529, 4
        %v532 = vor.u32 %v531, %v527
        %v533 = vrot.slane %v532, 4
        %v535 = vshll.u32 %v493, 16
        %v537 = vrot.slane %v535, 5
        %v538 = vsel %vm211, %v533, %v537
        %v540 = vshrl.u32 %v494, 16
        %v542 = vrot.slane %v540, 4
        %v543 = vshll.u32 %v494, 16
        %v545 = vrot.slane %v543, 5
        %v546 = vor.u32 %v542, %v545
        %v547 = vrot.slane %v546, 4
        %v549 = vshll.u32 %v495, 16
        %v551 = vrot.slane %v549, 5
        %v552 = vsel %vm211, %v547, %v551
        %v553 = vshrl.u32 %v495, 16
        %v555 = vrot.slane %v553, 4
        %v556 = vor.u32 %v555, %v551
        %v557 = vrot.slane %v556, 4
        %v559 = vshll.u32 %v496, 16
        %v561 = vrot.slane %v559, 5
        %v562 = vsel %vm211, %v557, %v561
        %v564 = vshrl.u32 %v497, 16
        %v566 = vrot.slane %v564, 4
        %v567 = vshll.u32 %v497, 16
        %v569 = vrot.slane %v567, 5
        %v570 = vor.u32 %v566, %v569
        %v571 = vrot.slane %v570, 4
        %v573 = vshll.u32 %v498, 16
        %v575 = vrot.slane %v573, 5
        %v576 = vsel %vm211, %v571, %v575
        %v577 = vshrl.u32 %v498, 16
        %v579 = vrot.slane %v577, 4
        %v580 = vor.u32 %v579, %v575
        %v581 = vrot.slane %v580, 4
        %v583 = vshll.u32 %v499, 16
        %v585 = vrot.slane %v583, 5
        %v586 = vsel %vm211, %v581, %v585
        %v588 = vshrl.u32 %v500, 16
        %v590 = vrot.slane %v588, 4
        %v591 = vshll.u32 %v500, 16
        %v593 = vrot.slane %v591, 5
        %v594 = vor.u32 %v590, %v593
        %v595 = vrot.slane %v594, 4
        %v597 = vshll.u32 %v501, 16
        %v599 = vrot.slane %v597, 5
        %v600 = vsel %vm211, %v595, %v599
        %v601 = vshrl.u32 %v501, 16
        %v603 = vrot.slane %v601, 4
        %v604 = vor.u32 %v603, %v599
        %v605 = vrot.slane %v604, 4
        %v607 = vshll.u32 %v502, 16
        %v609 = vrot.slane %v607, 5
        %v610 = vsel %vm211, %v605, %v609
        %v612 = vshrl.u32 %v503, 16
        %v614 = vrot.slane %v612, 4
        %v615 = vshll.u32 %v503, 16
        %v617 = vrot.slane %v615, 5
        %v618 = vor.u32 %v614, %v617
        %v619 = vrot.slane %v618, 4
        %v621 = vshll.u32 %v504, 16
        %v623 = vrot.slane %v621, 5
        %v624 = vsel %vm211, %v619, %v623
        %v625 = vshrl.u32 %v504, 16
        %v627 = vrot.slane %v625, 4
        %v628 = vor.u32 %v627, %v623
        %v629 = vrot.slane %v628, 4
        %v631 = vshll.u32 %v505, 16
        %v633 = vrot.slane %v631, 5
        %v634 = vsel %vm211, %v629, %v633
        %v636 = vshrl.u32 %v506, 16
        %v638 = vrot.slane %v636, 4
        %v639 = vshll.u32 %v506, 16
        %v641 = vrot.slane %v639, 5
        %v642 = vor.u32 %v638, %v641
        %v643 = vrot.slane %v642, 4
        %v645 = vshll.u32 %v507, 16
        %v647 = vrot.slane %v645, 5
        %v648 = vsel %vm211, %v643, %v647
        %v649 = vshrl.u32 %v507, 16
        %v651 = vrot.slane %v649, 4
        %v652 = vor.u32 %v651, %v647
        %v653 = vrot.slane %v652, 4
        %v655 = vshll.u32 %v508, 16
        %v657 = vrot.slane %v655, 5
        %v658 = vsel %vm211, %v653, %v657
        %v660 = vshrl.u32 %v509, 16
        %v662 = vrot.slane %v660, 4
        %v663 = vshll.u32 %v509, 16
        %v665 = vrot.slane %v663, 5
        %v666 = vor.u32 %v662, %v665
        %v667 = vrot.slane %v666, 4
        %v669 = vshll.u32 %v510, 16
        %v671 = vrot.slane %v669, 5
        %v672 = vsel %vm211, %v667, %v671
        %v673 = vshrl.u32 %v510, 16
        %v675 = vrot.slane %v673, 4
        %v676 = vor.u32 %v675, %v671
        %v677 = vrot.slane %v676, 4
        %v679 = vshll.u32 %v511, 16
        %v681 = vrot.slane %v679, 5
        %v682 = vsel %vm211, %v677, %v681
        %v684 = vshrl.u32 %v512, 16
        %v686 = vrot.slane %v684, 4
        %v687 = vshll.u32 %v512, 16
        %v689 = vrot.slane %v687, 5
        %v690 = vor.u32 %v686, %v689
        %v691 = vrot.slane %v690, 4
        %v693 = vshll.u32 %v513, 16
        %v695 = vrot.slane %v693, 5
        %v696 = vsel %vm211, %v691, %v695
        %v697 = vshrl.u32 %v513, 16
        %v699 = vrot.slane %v697, 4
        %v700 = vor.u32 %v699, %v695
        %v701 = vrot.slane %v700, 4
        %v703 = vshll.u32 %v514, 16
        %v705 = vrot.slane %v703, 5
        %v706 = vsel %vm211, %v701, %v705
        %v731 = vrot.slane %v491, 5
        %v732 = vrot.slane %v731, 4
        %v733 = vrot.slane %v492, 5
        %v734 = vsel %vm430, %v732, %v733
        %v735 = vrot.slane %v733, 4
        %v736 = vrot.slane %v493, 5
        %v737 = vsel %vm430, %v735, %v736
        %v738 = vrot.slane %v494, 5
        %v739 = vrot.slane %v738, 4
        %v740 = vrot.slane %v495, 5
        %v741 = vsel %vm430, %v739, %v740
        %v742 = vrot.slane %v740, 4
        %v743 = vrot.slane %v496, 5
        %v744 = vsel %vm430, %v742, %v743
        %v745 = vrot.slane %v497, 5
        %v746 = vrot.slane %v745, 4
        %v747 = vrot.slane %v498, 5
        %v748 = vsel %vm430, %v746, %v747
        %v749 = vrot.slane %v747, 4
        %v750 = vrot.slane %v499, 5
        %v751 = vsel %vm430, %v749, %v750
        %v752 = vrot.slane %v500, 5
        %v753 = vrot.slane %v752, 4
        %v754 = vrot.slane %v501, 5
        %v755 = vsel %vm430, %v753, %v754
        %v756 = vrot.slane %v754, 4
        %v757 = vrot.slane %v502, 5
        %v758 = vsel %vm430, %v756, %v757
        %v759 = vrot.slane %v503, 5
        %v760 = vrot.slane %v759, 4
        %v761 = vrot.slane %v504, 5
        %v762 = vsel %vm430, %v760, %v761
        %v763 = vrot.slane %v761, 4
        %v764 = vrot.slane %v505, 5
        %v765 = vsel %vm430, %v763, %v764
        %v766 = vrot.slane %v506, 5
        %v767 = vrot.slane %v766, 4
        %v768 = vrot.slane %v507, 5
        %v769 = vsel %vm430, %v767, %v768
        %v770 = vrot.slane %v768, 4
        %v771 = vrot.slane %v508, 5
        %v772 = vsel %vm430, %v770, %v771
        %v773 = vrot.slane %v509, 5
        %v774 = vrot.slane %v773, 4
        %v775 = vrot.slane %v510, 5
        %v776 = vsel %vm430, %v774, %v775
        %v777 = vrot.slane %v775, 4
        %v778 = vrot.slane %v511, 5
        %v779 = vsel %vm430, %v777, %v778
        %v780 = vrot.slane %v512, 5
        %v781 = vrot.slane %v780, 4
        %v782 = vrot.slane %v513, 5
        %v783 = vsel %vm430, %v781, %v782
        %v784 = vrot.slane %v782, 4
        %v785 = vrot.slane %v514, 5
        %v786 = vsel %vm430, %v784, %v785
        %s787 = sadd.s32 %s181, 2
        %s788 = smul.u32 %s787, 3
        %s789 = smul.addr %s788, 4
        %s790 = scalar_lea.vmem %s178, %s789
        %v791 = vld [vmem:[%s790] sm:$0xf]
        %v792 = vld [vmem:[%s790 + $0x4] sm:$0xf]
        %v793 = vld [vmem:[%s790 + $0x8] sm:$0x1]
        %v794 = vld [vmem:[%s790 + $0xc] sm:$0xf]
        %v795 = vld [vmem:[%s790 + $0x10] sm:$0xf]
        %v796 = vld [vmem:[%s790 + $0x14] sm:$0x1]
        %v797 = vld [vmem:[%s790 + $0x18] sm:$0xf]
        %v798 = vld [vmem:[%s790 + $0x1c] sm:$0xf]
        %v799 = vld [vmem:[%s790 + $0x20] sm:$0x1]
        %v800 = vld [vmem:[%s790 + $0x24] sm:$0xf]
        %v801 = vld [vmem:[%s790 + $0x28] sm:$0xf]
        %v802 = vld [vmem:[%s790 + $0x2c] sm:$0x1]
        %v803 = vld [vmem:[%s790 + $0x30] sm:$0xf]
        %v804 = vld [vmem:[%s790 + $0x34] sm:$0xf]
        %v805 = vld [vmem:[%s790 + $0x38] sm:$0x1]
        %v806 = vld [vmem:[%s790 + $0x3c] sm:$0xf]
        %v807 = vld [vmem:[%s790 + $0x40] sm:$0xf]
        %v808 = vld [vmem:[%s790 + $0x44] sm:$0x1]
        %v809 = vld [vmem:[%s790 + $0x48] sm:$0xf]
        %v810 = vld [vmem:[%s790 + $0x4c] sm:$0xf]
        %v811 = vld [vmem:[%s790 + $0x50] sm:$0x1]
        %v812 = vld [vmem:[%s790 + $0x54] sm:$0xf]
        %v813 = vld [vmem:[%s790 + $0x58] sm:$0xf]
        %v814 = vld [vmem:[%s790 + $0x5c] sm:$0x1]
        %v816 = vshrl.u32 %v791, 16
        %v818 = vrot.slane %v816, 4
        %v819 = vshll.u32 %v791, 16
        %v821 = vrot.slane %v819, 5
        %v822 = vor.u32 %v818, %v821
        %v823 = vrot.slane %v822, 4
        %v825 = vshll.u32 %v792, 16
        %v827 = vrot.slane %v825, 5
        %v828 = vsel %vm211, %v823, %v827
        %v829 = vshrl.u32 %v792, 16
        %v831 = vrot.slane %v829, 4
        %v832 = vor.u32 %v831, %v827
        %v833 = vrot.slane %v832, 4
        %v835 = vshll.u32 %v793, 16
        %v837 = vrot.slane %v835, 5
        %v838 = vsel %vm211, %v833, %v837
        %v840 = vshrl.u32 %v794, 16
        %v842 = vrot.slane %v840, 4
        %v843 = vshll.u32 %v794, 16
        %v845 = vrot.slane %v843, 5
        %v846 = vor.u32 %v842, %v845
        %v847 = vrot.slane %v846, 4
        %v849 = vshll.u32 %v795, 16
        %v851 = vrot.slane %v849, 5
        %v852 = vsel %vm211, %v847, %v851
        %v853 = vshrl.u32 %v795, 16
        %v855 = vrot.slane %v853, 4
        %v856 = vor.u32 %v855, %v851
        %v857 = vrot.slane %v856, 4
        %v859 = vshll.u32 %v796, 16
        %v861 = vrot.slane %v859, 5
        %v862 = vsel %vm211, %v857, %v861
        %v864 = vshrl.u32 %v797, 16
        %v866 = vrot.slane %v864, 4
        %v867 = vshll.u32 %v797, 16
        %v869 = vrot.slane %v867, 5
        %v870 = vor.u32 %v866, %v869
        %v871 = vrot.slane %v870, 4
        %v873 = vshll.u32 %v798, 16
        %v875 = vrot.slane %v873, 5
        %v876 = vsel %vm211, %v871, %v875
        %v877 = vshrl.u32 %v798, 16
        %v879 = vrot.slane %v877, 4
        %v880 = vor.u32 %v879, %v875
        %v881 = vrot.slane %v880, 4
        %v883 = vshll.u32 %v799, 16
        %v885 = vrot.slane %v883, 5
        %v886 = vsel %vm211, %v881, %v885
        %v888 = vshrl.u32 %v800, 16
        %v890 = vrot.slane %v888, 4
        %v891 = vshll.u32 %v800, 16
        %v893 = vrot.slane %v891, 5
        %v894 = vor.u32 %v890, %v893
        %v895 = vrot.slane %v894, 4
        %v897 = vshll.u32 %v801, 16
        %v899 = vrot.slane %v897, 5
        %v900 = vsel %vm211, %v895, %v899
        %v901 = vshrl.u32 %v801, 16
        %v903 = vrot.slane %v901, 4
        %v904 = vor.u32 %v903, %v899
        %v905 = vrot.slane %v904, 4
        %v907 = vshll.u32 %v802, 16
        %v909 = vrot.slane %v907, 5
        %v910 = vsel %vm211, %v905, %v909
        %v912 = vshrl.u32 %v803, 16
        %v914 = vrot.slane %v912, 4
        %v915 = vshll.u32 %v803, 16
        %v917 = vrot.slane %v915, 5
        %v918 = vor.u32 %v914, %v917
        %v919 = vrot.slane %v918, 4
        %v921 = vshll.u32 %v804, 16
        %v923 = vrot.slane %v921, 5
        %v924 = vsel %vm211, %v919, %v923
        %v925 = vshrl.u32 %v804, 16
        %v927 = vrot.slane %v925, 4
        %v928 = vor.u32 %v927, %v923
        %v929 = vrot.slane %v928, 4
        %v931 = vshll.u32 %v805, 16
        %v933 = vrot.slane %v931, 5
        %v934 = vsel %vm211, %v929, %v933
        %v936 = vshrl.u32 %v806, 16
        %v938 = vrot.slane %v936, 4
        %v939 = vshll.u32 %v806, 16
        %v941 = vrot.slane %v939, 5
        %v942 = vor.u32 %v938, %v941
        %v943 = vrot.slane %v942, 4
        %v945 = vshll.u32 %v807, 16
        %v947 = vrot.slane %v945, 5
        %v948 = vsel %vm211, %v943, %v947
        %v949 = vshrl.u32 %v807, 16
        %v951 = vrot.slane %v949, 4
        %v952 = vor.u32 %v951, %v947
        %v953 = vrot.slane %v952, 4
        %v955 = vshll.u32 %v808, 16
        %v957 = vrot.slane %v955, 5
        %v958 = vsel %vm211, %v953, %v957
        %v960 = vshrl.u32 %v809, 16
        %v962 = vrot.slane %v960, 4
        %v963 = vshll.u32 %v809, 16
        %v965 = vrot.slane %v963, 5
        %v966 = vor.u32 %v962, %v965
        %v967 = vrot.slane %v966, 4
        %v969 = vshll.u32 %v810, 16
        %v971 = vrot.slane %v969, 5
        %v972 = vsel %vm211, %v967, %v971
        %v973 = vshrl.u32 %v810, 16
        %v975 = vrot.slane %v973, 4
        %v976 = vor.u32 %v975, %v971
        %v977 = vrot.slane %v976, 4
        %v979 = vshll.u32 %v811, 16
        %v981 = vrot.slane %v979, 5
        %v982 = vsel %vm211, %v977, %v981
        %v984 = vshrl.u32 %v812, 16
        %v986 = vrot.slane %v984, 4
        %v987 = vshll.u32 %v812, 16
        %v989 = vrot.slane %v987, 5
        %v990 = vor.u32 %v986, %v989
        %v991 = vrot.slane %v990, 4
        %v993 = vshll.u32 %v813, 16
        %v995 = vrot.slane %v993, 5
        %v996 = vsel %vm211, %v991, %v995
        %v997 = vshrl.u32 %v813, 16
        %v999 = vrot.slane %v997, 4
        %v1000 = vor.u32 %v999, %v995
        %v1001 = vrot.slane %v1000, 4
        %v1003 = vshll.u32 %v814, 16
        %v1005 = vrot.slane %v1003, 5
        %v1006 = vsel %vm211, %v1001, %v1005
        %v1031 = vrot.slane %v791, 5
        %v1032 = vrot.slane %v1031, 4
        %v1033 = vrot.slane %v792, 5
        %v1034 = vsel %vm430, %v1032, %v1033
        %v1035 = vrot.slane %v1033, 4
        %v1036 = vrot.slane %v793, 5
        %v1037 = vsel %vm430, %v1035, %v1036
        %v1038 = vrot.slane %v794, 5
        %v1039 = vrot.slane %v1038, 4
        %v1040 = vrot.slane %v795, 5
        %v1041 = vsel %vm430, %v1039, %v1040
        %v1042 = vrot.slane %v1040, 4
        %v1043 = vrot.slane %v796, 5
        %v1044 = vsel %vm430, %v1042, %v1043
        %v1045 = vrot.slane %v797, 5
        %v1046 = vrot.slane %v1045, 4
        %v1047 = vrot.slane %v798, 5
        %v1048 = vsel %vm430, %v1046, %v1047
        %v1049 = vrot.slane %v1047, 4
        %v1050 = vrot.slane %v799, 5
        %v1051 = vsel %vm430, %v1049, %v1050
        %v1052 = vrot.slane %v800, 5
        %v1053 = vrot.slane %v1052, 4
        %v1054 = vrot.slane %v801, 5
        %v1055 = vsel %vm430, %v1053, %v1054
        %v1056 = vrot.slane %v1054, 4
        %v1057 = vrot.slane %v802, 5
        %v1058 = vsel %vm430, %v1056, %v1057
        %v1059 = vrot.slane %v803, 5
        %v1060 = vrot.slane %v1059, 4
        %v1061 = vrot.slane %v804, 5
        %v1062 = vsel %vm430, %v1060, %v1061
        %v1063 = vrot.slane %v1061, 4
        %v1064 = vrot.slane %v805, 5
        %v1065 = vsel %vm430, %v1063, %v1064
        %v1066 = vrot.slane %v806, 5
        %v1067 = vrot.slane %v1066, 4
        %v1068 = vrot.slane %v807, 5
        %v1069 = vsel %vm430, %v1067, %v1068
        %v1070 = vrot.slane %v1068, 4
        %v1071 = vrot.slane %v808, 5
        %v1072 = vsel %vm430, %v1070, %v1071
        %v1073 = vrot.slane %v809, 5
        %v1074 = vrot.slane %v1073, 4
        %v1075 = vrot.slane %v810, 5
        %v1076 = vsel %vm430, %v1074, %v1075
        %v1077 = vrot.slane %v1075, 4
        %v1078 = vrot.slane %v811, 5
        %v1079 = vsel %vm430, %v1077, %v1078
        %v1080 = vrot.slane %v812, 5
        %v1081 = vrot.slane %v1080, 4
        %v1082 = vrot.slane %v813, 5
        %v1083 = vsel %vm430, %v1081, %v1082
        %v1084 = vrot.slane %v1082, 4
        %v1085 = vrot.slane %v814, 5
        %v1086 = vsel %vm430, %v1084, %v1085
        %v1087 = vld [vmem:[%s2] sm:$0x1]
        %v1089 = vlaneseq
        %v1090 = vshrl.u32 %v1089, 7
        %v1091 = vsub.s32 0, %v1090
        %v1092 = vrot.slane %v1087, %v1091
        %v1094 = vunpack.c.l.b16 %v185
        %v1095 = vunpack.c.l.b16 %v186
        %v1096 = vunpack.c.l.b16 %v188
        %v1097 = vunpack.c.l.b16 %v189
        %v1098 = vunpack.c.l.b16 %v191
        %v1099 = vunpack.c.l.b16 %v192
        %v1100 = vunpack.c.l.b16 %v194
        %v1101 = vunpack.c.l.b16 %v195
        %v1102 = vunpack.c.l.b16 %v197
        %v1103 = vunpack.c.l.b16 %v198
        %v1104 = vunpack.c.l.b16 %v200
        %v1105 = vunpack.c.l.b16 %v201
        %v1106 = vunpack.c.l.b16 %v203
        %v1107 = vunpack.c.l.b16 %v204
        %v1108 = vunpack.c.l.b16 %v206
        %v1109 = vunpack.c.l.b16 %v207
        %v1110 = vpack.c.b16 %v1095, %v1094
        %v1111 = vpack.c.b16 %v1097, %v1096
        %v1112 = vpack.c.b16 %v1099, %v1098
        %v1113 = vpack.c.b16 %v1101, %v1100
        %v1114 = vpack.c.b16 %v1103, %v1102
        %v1115 = vpack.c.b16 %v1105, %v1104
        %v1116 = vpack.c.b16 %v1107, %v1106
        %v1117 = vpack.c.b16 %v1109, %v1108
        %v1118 = vunpack.c.l.b16 %v225
        %v1119 = vunpack.c.l.b16 %v235
        %v1120 = vunpack.c.l.b16 %v249
        %v1121 = vunpack.c.l.b16 %v259
        %v1122 = vunpack.c.l.b16 %v273
        %v1123 = vunpack.c.l.b16 %v283
        %v1124 = vunpack.c.l.b16 %v297
        %v1125 = vunpack.c.l.b16 %v307
        %v1126 = vunpack.c.l.b16 %v321
        %v1127 = vunpack.c.l.b16 %v331
        %v1128 = vunpack.c.l.b16 %v345
        %v1129 = vunpack.c.l.b16 %v355
        %v1130 = vunpack.c.l.b16 %v369
        %v1131 = vunpack.c.l.b16 %v379
        %v1132 = vunpack.c.l.b16 %v393
        %v1133 = vunpack.c.l.b16 %v403
        %v1134 = vpack.c.b16 %v1119, %v1118
        %v1135 = vpack.c.b16 %v1121, %v1120
        %v1136 = vpack.c.b16 %v1123, %v1122
        %v1137 = vpack.c.b16 %v1125, %v1124
        %v1138 = vpack.c.b16 %v1127, %v1126
        %v1139 = vpack.c.b16 %v1129, %v1128
        %v1140 = vpack.c.b16 %v1131, %v1130
        %v1141 = vpack.c.b16 %v1133, %v1132
        %1142 = vrot.lane.b32.xlu0 %v1134, 4
        %v1143 = vpop.permute.xlu0 %1142
        %1144 = vrot.lane.b32.xlu0 %v1135, 4
        %v1145 = vpop.permute.xlu0 %1144
        %1146 = vrot.lane.b32.xlu0 %v1136, 4
        %v1147 = vpop.permute.xlu0 %1146
        %1148 = vrot.lane.b32.xlu0 %v1137, 4
        %v1149 = vpop.permute.xlu0 %1148
        %1150 = vrot.lane.b32.xlu0 %v1138, 4
        %v1151 = vpop.permute.xlu0 %1150
        %1152 = vrot.lane.b32.xlu0 %v1139, 4
        %v1153 = vpop.permute.xlu0 %1152
        %1154 = vrot.lane.b32.xlu0 %v1140, 4
        %v1155 = vpop.permute.xlu0 %1154
        %1156 = vrot.lane.b32.xlu0 %v1141, 4
        %v1157 = vpop.permute.xlu0 %1156
        %v1158 = vunpack.c.l.b16 %v491
        %v1159 = vunpack.c.l.b16 %v492
        %v1160 = vunpack.c.l.b16 %v494
        %v1161 = vunpack.c.l.b16 %v495
        %v1162 = vunpack.c.l.b16 %v497
        %v1163 = vunpack.c.l.b16 %v498
        %v1164 = vunpack.c.l.b16 %v500
        %v1165 = vunpack.c.l.b16 %v501
        %v1166 = vunpack.c.l.b16 %v503
        %v1167 = vunpack.c.l.b16 %v504
        %v1168 = vunpack.c.l.b16 %v506
        %v1169 = vunpack.c.l.b16 %v507
        %v1170 = vunpack.c.l.b16 %v509
        %v1171 = vunpack.c.l.b16 %v510
        %v1172 = vunpack.c.l.b16 %v512
        %v1173 = vunpack.c.l.b16 %v513
        %v1174 = vpack.c.b16 %v1159, %v1158
        %v1175 = vpack.c.b16 %v1161, %v1160
        %v1176 = vpack.c.b16 %v1163, %v1162
        %v1177 = vpack.c.b16 %v1165, %v1164
        %v1178 = vpack.c.b16 %v1167, %v1166
        %v1179 = vpack.c.b16 %v1169, %v1168
        %v1180 = vpack.c.b16 %v1171, %v1170
        %v1181 = vpack.c.b16 %v1173, %v1172
        %1182 = vrot.lane.b32.xlu0 %v1174, 8
        %v1183 = vpop.permute.xlu0 %1182
        %1184 = vrot.lane.b32.xlu0 %v1175, 8
        %v1185 = vpop.permute.xlu0 %1184
        %1186 = vrot.lane.b32.xlu0 %v1176, 8
        %v1187 = vpop.permute.xlu0 %1186
        %1188 = vrot.lane.b32.xlu0 %v1177, 8
        %v1189 = vpop.permute.xlu0 %1188
        %1190 = vrot.lane.b32.xlu0 %v1178, 8
        %v1191 = vpop.permute.xlu0 %1190
        %1192 = vrot.lane.b32.xlu0 %v1179, 8
        %v1193 = vpop.permute.xlu0 %1192
        %1194 = vrot.lane.b32.xlu0 %v1180, 8
        %v1195 = vpop.permute.xlu0 %1194
        %1196 = vrot.lane.b32.xlu0 %v1181, 8
        %v1197 = vpop.permute.xlu0 %1196
        %v1198 = vunpack.c.l.b16 %v528
        %v1199 = vunpack.c.l.b16 %v538
        %v1200 = vunpack.c.l.b16 %v552
        %v1201 = vunpack.c.l.b16 %v562
        %v1202 = vunpack.c.l.b16 %v576
        %v1203 = vunpack.c.l.b16 %v586
        %v1204 = vunpack.c.l.b16 %v600
        %v1205 = vunpack.c.l.b16 %v610
        %v1206 = vunpack.c.l.b16 %v624
        %v1207 = vunpack.c.l.b16 %v634
        %v1208 = vunpack.c.l.b16 %v648
        %v1209 = vunpack.c.l.b16 %v658
        %v1210 = vunpack.c.l.b16 %v672
        %v1211 = vunpack.c.l.b16 %v682
        %v1212 = vunpack.c.l.b16 %v696
        %v1213 = vunpack.c.l.b16 %v706
        %v1214 = vpack.c.b16 %v1199, %v1198
        %v1215 = vpack.c.b16 %v1201, %v1200
        %v1216 = vpack.c.b16 %v1203, %v1202
        %v1217 = vpack.c.b16 %v1205, %v1204
        %v1218 = vpack.c.b16 %v1207, %v1206
        %v1219 = vpack.c.b16 %v1209, %v1208
        %v1220 = vpack.c.b16 %v1211, %v1210
        %v1221 = vpack.c.b16 %v1213, %v1212
        %1222 = vrot.lane.b32.xlu0 %v1214, 12
        %v1223 = vpop.permute.xlu0 %1222
        %1224 = vrot.lane.b32.xlu0 %v1215, 12
        %v1225 = vpop.permute.xlu0 %1224
        %1226 = vrot.lane.b32.xlu0 %v1216, 12
        %v1227 = vpop.permute.xlu0 %1226
        %1228 = vrot.lane.b32.xlu0 %v1217, 12
        %v1229 = vpop.permute.xlu0 %1228
        %1230 = vrot.lane.b32.xlu0 %v1218, 12
        %v1231 = vpop.permute.xlu0 %1230
        %1232 = vrot.lane.b32.xlu0 %v1219, 12
        %v1233 = vpop.permute.xlu0 %1232
        %1234 = vrot.lane.b32.xlu0 %v1220, 12
        %v1235 = vpop.permute.xlu0 %1234
        %1236 = vrot.lane.b32.xlu0 %v1221, 12
        %v1237 = vpop.permute.xlu0 %1236
        %vm1238 = vcmask 31744
        %v1241 = vsel %vm1238, %v1110, %v1143
        %v1244 = vsel %vm1238, %v1111, %v1145
        %v1247 = vsel %vm1238, %v1112, %v1147
        %v1250 = vsel %vm1238, %v1113, %v1149
        %v1253 = vsel %vm1238, %v1114, %v1151
        %v1256 = vsel %vm1238, %v1115, %v1153
        %v1259 = vsel %vm1238, %v1116, %v1155
        %v1262 = vsel %vm1238, %v1117, %v1157
        %vm1263 = vcmask 64512
        %v1265 = vsel %vm1263, %v1241, %v1183
        %v1267 = vsel %vm1263, %v1244, %v1185
        %v1269 = vsel %vm1263, %v1247, %v1187
        %v1271 = vsel %vm1263, %v1250, %v1189
        %v1273 = vsel %vm1263, %v1253, %v1191
        %v1275 = vsel %vm1263, %v1256, %v1193
        %v1277 = vsel %vm1263, %v1259, %v1195
        %v1279 = vsel %vm1263, %v1262, %v1197
        %vm1280 = vcmask 97280
        %v1282 = vsel %vm1280, %v1265, %v1223
        %v1284 = vsel %vm1280, %v1267, %v1225
        %v1286 = vsel %vm1280, %v1269, %v1227
        %v1288 = vsel %vm1280, %v1271, %v1229
        %v1290 = vsel %vm1280, %v1273, %v1231
        %v1292 = vsel %vm1280, %v1275, %v1233
        %v1294 = vsel %vm1280, %v1277, %v1235
        %v1296 = vsel %vm1280, %v1279, %v1237
        %v1297 = vld [vmem:[%s1] sm:$0xf]
        %v1298 = vld [vmem:[%s1 + $0x4] sm:$0xf]
        %v1301 = vunpack.c.l.b16 %v1297
        %v1302 = vunpack.c.l.b16 %v1298
        %v1303 = vpack.c.b16 %v1302, %v1301
        %vm1305 = vcmask 130048
        %v1306 = vsel %vm1305, %v1282, 0
        %v1308 = vsel %vm1305, %v1284, 0
        %v1310 = vsel %vm1305, %v1286, 0
        %v1312 = vsel %vm1305, %v1288, 0
        %v1314 = vsel %vm1305, %v1290, 0
        %v1316 = vsel %vm1305, %v1292, 0
        %v1318 = vsel %vm1305, %v1294, 0
        %v1320 = vsel %vm1305, %v1296, 0
        %1322 = vmatprep.subr.bf16.mxu0 0
        %1323 = vmatpush1.bf16.msra.mxu0 0
        %1324 = vmatprep.subr.bf16.mxu0 0
        %1325 = vmatpush1.bf16.msra.mxu0 0
        %1326 = vmatprep.subr.bf16.mxu0 0
        %1327 = vmatpush1.bf16.msra.mxu0 0
        %1328 = vmatprep.subr.bf16.mxu0 0
        %1329 = vmatpush1.bf16.msra.mxu0 0
        %1330 = vmatprep.subr.bf16.mxu0 0
        %1331 = vmatpush1.bf16.msra.mxu0 0
        %1332 = vmatprep.subr.bf16.mxu0 0
        %1333 = vmatpush1.bf16.msra.mxu0 0
        %1334 = vmatprep.subr.bf16.mxu0 0
        %1335 = vmatpush1.bf16.msra.mxu0 0
        %1336 = vmatprep.subr.bf16.mxu0 0
        %1337 = vmatpush1.bf16.msra.mxu0 %v1303
        %1338 = vmatprep.subr.bf16.mxu0 0
        %1339 = vmatpush2.bf16.msra.mxu0 0
        %1340 = vmatprep.subr.bf16.mxu0 0
        %1341 = vmatpush2.bf16.msra.mxu0 0
        %1342 = vmatprep.subr.bf16.mxu0 0
        %1343 = vmatpush2.bf16.msra.mxu0 0
        %1344 = vmatprep.subr.bf16.mxu0 0
        %1345 = vmatpush2.bf16.msra.mxu0 0
        %1346 = vmatprep.subr.bf16.mxu0 0
        %1347 = vmatpush2.bf16.msra.mxu0 0
        %1348 = vmatprep.subr.bf16.mxu0 0
        %1349 = vmatpush2.bf16.msra.mxu0 0
        %1350 = vmatprep.subr.bf16.mxu0 0
        %1351 = vmatpush2.bf16.msra.mxu0 0
        %1352 = vmatprep.subr.bf16.mxu0 0
        %1353 = vmatpush2.bf16.msra.mxu0 0
        %1354 = vmatprep.mubr.bf16.mxu0 0
        %1355 = vmatmul.mubr.bf16.gmra.mxu0 %v1306
        %v1356 = vpop.f32.mrf.mxu0
        %v1357 = vadd.f32 %v1092, %v1356
        %v1358 = vpop.f32.mrf.mxu0
        %v1359 = vpop.f32.mrf.mxu0
        %v1360 = vadd.f32 %v1092, %v1359
        %v1361 = vpop.f32.mrf.mxu0
        %1362 = vmatprep.mubr.bf16.mxu0 0
        %1363 = vmatmul.mubr.bf16.gmra.mxu0 %v1308
        %v1364 = vpop.f32.mrf.mxu0
        %v1365 = vadd.f32 %v1092, %v1364
        %v1366 = vpop.f32.mrf.mxu0
        %v1367 = vpop.f32.mrf.mxu0
        %v1368 = vadd.f32 %v1092, %v1367
        %v1369 = vpop.f32.mrf.mxu0
        %1370 = vmatprep.mubr.bf16.mxu0 0
        %1371 = vmatmul.mubr.bf16.gmra.mxu0 %v1310
        %v1372 = vpop.f32.mrf.mxu0
        %v1373 = vadd.f32 %v1092, %v1372
        %v1374 = vpop.f32.mrf.mxu0
        %v1375 = vpop.f32.mrf.mxu0
        %v1376 = vadd.f32 %v1092, %v1375
        %v1377 = vpop.f32.mrf.mxu0
        %1378 = vmatprep.mubr.bf16.mxu0 0
        %1379 = vmatmul.mubr.bf16.gmra.mxu0 %v1312
        %v1380 = vpop.f32.mrf.mxu0
        %v1381 = vadd.f32 %v1092, %v1380
        %v1382 = vpop.f32.mrf.mxu0
        %v1383 = vpop.f32.mrf.mxu0
        %v1384 = vadd.f32 %v1092, %v1383
        %v1385 = vpop.f32.mrf.mxu0
        %1386 = vmatprep.mubr.bf16.mxu0 0
        %1387 = vmatmul.mubr.bf16.gmra.mxu0 %v1314
        %v1388 = vpop.f32.mrf.mxu0
        %v1389 = vadd.f32 %v1092, %v1388
        %v1390 = vpop.f32.mrf.mxu0
        %v1391 = vpop.f32.mrf.mxu0
        %v1392 = vadd.f32 %v1092, %v1391
        %v1393 = vpop.f32.mrf.mxu0
        %1394 = vmatprep.mubr.bf16.mxu0 0
        %1395 = vmatmul.mubr.bf16.gmra.mxu0 %v1316
        %v1396 = vpop.f32.mrf.mxu0
        %v1397 = vadd.f32 %v1092, %v1396
        %v1398 = vpop.f32.mrf.mxu0
        %v1399 = vpop.f32.mrf.mxu0
        %v1400 = vadd.f32 %v1092, %v1399
        %v1401 = vpop.f32.mrf.mxu0
        %1402 = vmatprep.mubr.bf16.mxu0 0
        %1403 = vmatmul.mubr.bf16.gmra.mxu0 %v1318
        %v1404 = vpop.f32.mrf.mxu0
        %v1405 = vadd.f32 %v1092, %v1404
        %v1406 = vpop.f32.mrf.mxu0
        %v1407 = vpop.f32.mrf.mxu0
        %v1408 = vadd.f32 %v1092, %v1407
        %v1409 = vpop.f32.mrf.mxu0
        %1410 = vmatprep.mubr.bf16.mxu0 0
        %1411 = vmatmul.mubr.bf16.gmra.mxu0 %v1320
        %v1412 = vpop.f32.mrf.mxu0
        %v1413 = vadd.f32 %v1092, %v1412
        %v1414 = vpop.f32.mrf.mxu0
        %v1415 = vpop.f32.mrf.mxu0
        %v1416 = vadd.f32 %v1092, %v1415
        %v1417 = vpop.f32.mrf.mxu0
        %1418 = vdwg.mxu0
        %v1419 = vmax.f32 %v1357, 0.0
        %v1420 = vmax.f32 %v1360, 0.0
        %v1421 = vmax.f32 %v1365, 0.0
        %v1422 = vmax.f32 %v1368, 0.0
        %v1423 = vmax.f32 %v1373, 0.0
        %v1424 = vmax.f32 %v1376, 0.0
        %v1425 = vmax.f32 %v1381, 0.0
        %v1426 = vmax.f32 %v1384, 0.0
        %v1427 = vmax.f32 %v1389, 0.0
        %v1428 = vmax.f32 %v1392, 0.0
        %v1429 = vmax.f32 %v1397, 0.0
        %v1430 = vmax.f32 %v1400, 0.0
        %v1431 = vmax.f32 %v1405, 0.0
        %v1432 = vmax.f32 %v1408, 0.0
        %v1433 = vmax.f32 %v1413, 0.0
        %v1434 = vmax.f32 %v1416, 0.0
        %v1435 = vpack.c.bf16 %v1420, %v1419
        %v1436 = vpack.c.bf16 %v1422, %v1421
        %v1437 = vpack.c.bf16 %v1424, %v1423
        %v1438 = vpack.c.bf16 %v1426, %v1425
        %v1439 = vpack.c.bf16 %v1428, %v1427
        %v1440 = vpack.c.bf16 %v1430, %v1429
        %v1441 = vpack.c.bf16 %v1432, %v1431
        %v1442 = vpack.c.bf16 %v1434, %v1433
        %v1451 = vunpack.c.l.b16 %v1435
        %v1452 = vunpack.c.h.b16 %v1435
        %v1453 = vunpack.c.l.b16 %v1436
        %v1454 = vunpack.c.h.b16 %v1436
        %v1455 = vunpack.c.l.b16 %v1437
        %v1456 = vunpack.c.h.b16 %v1437
        %v1457 = vunpack.c.l.b16 %v1438
        %v1458 = vunpack.c.h.b16 %v1438
        %v1459 = vunpack.c.l.b16 %v1439
        %v1460 = vunpack.c.h.b16 %v1439
        %v1461 = vunpack.c.l.b16 %v1440
        %v1462 = vunpack.c.h.b16 %v1440
        %v1463 = vunpack.c.l.b16 %v1441
        %v1464 = vunpack.c.h.b16 %v1441
        %v1465 = vunpack.c.l.b16 %v1442
        %v1466 = vunpack.c.h.b16 %v1442
        %v1467 = vpack.c.b16 %v1451, %v1451
        %v1468 = vpack.c.b16 %v1452, %v1452
        %v1469 = vpack.c.b16 %v1453, %v1453
        %v1470 = vpack.c.b16 %v1454, %v1454
        %v1471 = vpack.c.b16 %v1455, %v1455
        %v1472 = vpack.c.b16 %v1456, %v1456
        %v1473 = vpack.c.b16 %v1457, %v1457
        %v1474 = vpack.c.b16 %v1458, %v1458
        %v1475 = vpack.c.b16 %v1459, %v1459
        %v1476 = vpack.c.b16 %v1460, %v1460
        %v1477 = vpack.c.b16 %v1461, %v1461
        %v1478 = vpack.c.b16 %v1462, %v1462
        %v1479 = vpack.c.b16 %v1463, %v1463
        %v1480 = vpack.c.b16 %v1464, %v1464
        %v1481 = vpack.c.b16 %v1465, %v1465
        %v1482 = vpack.c.b16 %v1466, %v1466
        %vm1499 = vcmask 60416
        %1500 = vst.msk [vmem:[%s173] sm:$0xf] %vm1499, %v1467
        %1501 = vst.msk [vmem:[%s173 + $0x4] sm:$0xf] %vm1499, %v1468
        %1502 = vst.msk [vmem:[%s173 + $0x8] sm:$0xf] %vm1499, %v1469
        %1503 = vst.msk [vmem:[%s173 + $0xc] sm:$0xf] %vm1499, %v1470
        %1504 = vst.msk [vmem:[%s173 + $0x10] sm:$0xf] %vm1499, %v1471
        %1505 = vst.msk [vmem:[%s173 + $0x14] sm:$0xf] %vm1499, %v1472
        %1506 = vst.msk [vmem:[%s173 + $0x18] sm:$0xf] %vm1499, %v1473
        %1507 = vst.msk [vmem:[%s173 + $0x1c] sm:$0xf] %vm1499, %v1474
        %1508 = vst.msk [vmem:[%s173 + $0x20] sm:$0xf] %vm1499, %v1475
        %1509 = vst.msk [vmem:[%s173 + $0x24] sm:$0xf] %vm1499, %v1476
        %1510 = vst.msk [vmem:[%s173 + $0x28] sm:$0xf] %vm1499, %v1477
        %1511 = vst.msk [vmem:[%s173 + $0x2c] sm:$0xf] %vm1499, %v1478
        %1512 = vst.msk [vmem:[%s173 + $0x30] sm:$0xf] %vm1499, %v1479
        %1513 = vst.msk [vmem:[%s173 + $0x34] sm:$0xf] %vm1499, %v1480
        %1514 = vst.msk [vmem:[%s173 + $0x38] sm:$0xf] %vm1499, %v1481
        %1515 = vst.msk [vmem:[%s173 + $0x3c] sm:$0xf] %vm1499, %v1482
        %v1516 = vunpack.c.l.b16 %v434
        %v1517 = vunpack.c.l.b16 %v437
        %v1518 = vunpack.c.l.b16 %v441
        %v1519 = vunpack.c.l.b16 %v444
        %v1520 = vunpack.c.l.b16 %v448
        %v1521 = vunpack.c.l.b16 %v451
        %v1522 = vunpack.c.l.b16 %v455
        %v1523 = vunpack.c.l.b16 %v458
        %v1524 = vunpack.c.l.b16 %v462
        %v1525 = vunpack.c.l.b16 %v465
        %v1526 = vunpack.c.l.b16 %v469
        %v1527 = vunpack.c.l.b16 %v472
        %v1528 = vunpack.c.l.b16 %v476
        %v1529 = vunpack.c.l.b16 %v479
        %v1530 = vunpack.c.l.b16 %v483
        %v1531 = vunpack.c.l.b16 %v486
        %v1532 = vpack.c.b16 %v1517, %v1516
        %v1533 = vpack.c.b16 %v1519, %v1518
        %v1534 = vpack.c.b16 %v1521, %v1520
        %v1535 = vpack.c.b16 %v1523, %v1522
        %v1536 = vpack.c.b16 %v1525, %v1524
        %v1537 = vpack.c.b16 %v1527, %v1526
        %v1538 = vpack.c.b16 %v1529, %v1528
        %v1539 = vpack.c.b16 %v1531, %v1530
        %1540 = vrot.lane.b32.xlu0 %v1532, 4
        %v1541 = vpop.permute.xlu0 %1540
        %1542 = vrot.lane.b32.xlu0 %v1533, 4
        %v1543 = vpop.permute.xlu0 %1542
        %1544 = vrot.lane.b32.xlu0 %v1534, 4
        %v1545 = vpop.permute.xlu0 %1544
        %1546 = vrot.lane.b32.xlu0 %v1535, 4
        %v1547 = vpop.permute.xlu0 %1546
        %1548 = vrot.lane.b32.xlu0 %v1536, 4
        %v1549 = vpop.permute.xlu0 %1548
        %1550 = vrot.lane.b32.xlu0 %v1537, 4
        %v1551 = vpop.permute.xlu0 %1550
        %1552 = vrot.lane.b32.xlu0 %v1538, 4
        %v1553 = vpop.permute.xlu0 %1552
        %1554 = vrot.lane.b32.xlu0 %v1539, 4
        %v1555 = vpop.permute.xlu0 %1554
        %1556 = vrot.lane.b32.xlu0 %v1214, 8
        %v1557 = vpop.permute.xlu0 %1556
        %1558 = vrot.lane.b32.xlu0 %v1215, 8
        %v1559 = vpop.permute.xlu0 %1558
        %1560 = vrot.lane.b32.xlu0 %v1216, 8
        %v1561 = vpop.permute.xlu0 %1560
        %1562 = vrot.lane.b32.xlu0 %v1217, 8
        %v1563 = vpop.permute.xlu0 %1562
        %1564 = vrot.lane.b32.xlu0 %v1218, 8
        %v1565 = vpop.permute.xlu0 %1564
        %1566 = vrot.lane.b32.xlu0 %v1219, 8
        %v1567 = vpop.permute.xlu0 %1566
        %1568 = vrot.lane.b32.xlu0 %v1220, 8
        %v1569 = vpop.permute.xlu0 %1568
        %1570 = vrot.lane.b32.xlu0 %v1221, 8
        %v1571 = vpop.permute.xlu0 %1570
        %v1572 = vunpack.c.l.b16 %v734
        %v1573 = vunpack.c.l.b16 %v737
        %v1574 = vunpack.c.l.b16 %v741
        %v1575 = vunpack.c.l.b16 %v744
        %v1576 = vunpack.c.l.b16 %v748
        %v1577 = vunpack.c.l.b16 %v751
        %v1578 = vunpack.c.l.b16 %v755
        %v1579 = vunpack.c.l.b16 %v758
        %v1580 = vunpack.c.l.b16 %v762
        %v1581 = vunpack.c.l.b16 %v765
        %v1582 = vunpack.c.l.b16 %v769
        %v1583 = vunpack.c.l.b16 %v772
        %v1584 = vunpack.c.l.b16 %v776
        %v1585 = vunpack.c.l.b16 %v779
        %v1586 = vunpack.c.l.b16 %v783
        %v1587 = vunpack.c.l.b16 %v786
        %v1588 = vpack.c.b16 %v1573, %v1572
        %v1589 = vpack.c.b16 %v1575, %v1574
        %v1590 = vpack.c.b16 %v1577, %v1576
        %v1591 = vpack.c.b16 %v1579, %v1578
        %v1592 = vpack.c.b16 %v1581, %v1580
        %v1593 = vpack.c.b16 %v1583, %v1582
        %v1594 = vpack.c.b16 %v1585, %v1584
        %v1595 = vpack.c.b16 %v1587, %v1586
        %1596 = vrot.lane.b32.xlu0 %v1588, 12
        %v1597 = vpop.permute.xlu0 %1596
        %1598 = vrot.lane.b32.xlu0 %v1589, 12
        %v1599 = vpop.permute.xlu0 %1598
        %1600 = vrot.lane.b32.xlu0 %v1590, 12
        %v1601 = vpop.permute.xlu0 %1600
        %1602 = vrot.lane.b32.xlu0 %v1591, 12
        %v1603 = vpop.permute.xlu0 %1602
        %1604 = vrot.lane.b32.xlu0 %v1592, 12
        %v1605 = vpop.permute.xlu0 %1604
        %1606 = vrot.lane.b32.xlu0 %v1593, 12
        %v1607 = vpop.permute.xlu0 %1606
        %1608 = vrot.lane.b32.xlu0 %v1594, 12
        %v1609 = vpop.permute.xlu0 %1608
        %1610 = vrot.lane.b32.xlu0 %v1595, 12
        %v1611 = vpop.permute.xlu0 %1610
        %v1614 = vsel %vm1238, %v1134, %v1541
        %v1617 = vsel %vm1238, %v1135, %v1543
        %v1620 = vsel %vm1238, %v1136, %v1545
        %v1623 = vsel %vm1238, %v1137, %v1547
        %v1626 = vsel %vm1238, %v1138, %v1549
        %v1629 = vsel %vm1238, %v1139, %v1551
        %v1632 = vsel %vm1238, %v1140, %v1553
        %v1635 = vsel %vm1238, %v1141, %v1555
        %v1637 = vsel %vm1263, %v1614, %v1557
        %v1639 = vsel %vm1263, %v1617, %v1559
        %v1641 = vsel %vm1263, %v1620, %v1561
        %v1643 = vsel %vm1263, %v1623, %v1563
        %v1645 = vsel %vm1263, %v1626, %v1565
        %v1647 = vsel %vm1263, %v1629, %v1567
        %v1649 = vsel %vm1263, %v1632, %v1569
        %v1651 = vsel %vm1263, %v1635, %v1571
        %v1653 = vsel %vm1280, %v1637, %v1597
        %v1655 = vsel %vm1280, %v1639, %v1599
        %v1657 = vsel %vm1280, %v1641, %v1601
        %v1659 = vsel %vm1280, %v1643, %v1603
        %v1661 = vsel %vm1280, %v1645, %v1605
        %v1663 = vsel %vm1280, %v1647, %v1607
        %v1665 = vsel %vm1280, %v1649, %v1609
        %v1667 = vsel %vm1280, %v1651, %v1611
        %s1668 = scalar_lea.vmem %s1, 8
        %v1669 = vld [vmem:[%s1668] sm:$0xf]
        %v1670 = vld [vmem:[%s1668 + $0x4] sm:$0xf]
        %v1673 = vunpack.c.l.b16 %v1669
        %v1674 = vunpack.c.l.b16 %v1670
        %v1675 = vpack.c.b16 %v1674, %v1673
        %v1677 = vsel %vm1305, %v1653, 0
        %v1679 = vsel %vm1305, %v1655, 0
        %v1681 = vsel %vm1305, %v1657, 0
        %v1683 = vsel %vm1305, %v1659, 0
        %v1685 = vsel %vm1305, %v1661, 0
        %v1687 = vsel %vm1305, %v1663, 0
        %v1689 = vsel %vm1305, %v1665, 0
        %v1691 = vsel %vm1305, %v1667, 0
        %1693 = vmatprep.subr.bf16.mxu0 0
        %1694 = vmatpush1.bf16.msra.mxu0 0
        %1695 = vmatprep.subr.bf16.mxu0 0
        %1696 = vmatpush1.bf16.msra.mxu0 0
        %1697 = vmatprep.subr.bf16.mxu0 0
        %1698 = vmatpush1.bf16.msra.mxu0 0
        %1699 = vmatprep.subr.bf16.mxu0 0
        %1700 = vmatpush1.bf16.msra.mxu0 0
        %1701 = vmatprep.subr.bf16.mxu0 0
        %1702 = vmatpush1.bf16.msra.mxu0 0
        %1703 = vmatprep.subr.bf16.mxu0 0
        %1704 = vmatpush1.bf16.msra.mxu0 0
        %1705 = vmatprep.subr.bf16.mxu0 0
        %1706 = vmatpush1.bf16.msra.mxu0 0
        %1707 = vmatprep.subr.bf16.mxu0 0
        %1708 = vmatpush1.bf16.msra.mxu0 %v1675
        %1709 = vmatprep.subr.bf16.mxu0 0
        %1710 = vmatpush2.bf16.msra.mxu0 0
        %1711 = vmatprep.subr.bf16.mxu0 0
        %1712 = vmatpush2.bf16.msra.mxu0 0
        %1713 = vmatprep.subr.bf16.mxu0 0
        %1714 = vmatpush2.bf16.msra.mxu0 0
        %1715 = vmatprep.subr.bf16.mxu0 0
        %1716 = vmatpush2.bf16.msra.mxu0 0
        %1717 = vmatprep.subr.bf16.mxu0 0
        %1718 = vmatpush2.bf16.msra.mxu0 0
        %1719 = vmatprep.subr.bf16.mxu0 0
        %1720 = vmatpush2.bf16.msra.mxu0 0
        %1721 = vmatprep.subr.bf16.mxu0 0
        %1722 = vmatpush2.bf16.msra.mxu0 0
        %1723 = vmatprep.subr.bf16.mxu0 0
        %1724 = vmatpush2.bf16.msra.mxu0 0
        %1725 = vmatprep.mubr.bf16.mxu0 0
        %1726 = vmatmul.mubr.bf16.gmra.mxu0 %v1677
        %v1727 = vpop.f32.mrf.mxu0
        %v1728 = vadd.f32 %v1092, %v1727
        %v1729 = vpop.f32.mrf.mxu0
        %v1730 = vpop.f32.mrf.mxu0
        %v1731 = vadd.f32 %v1092, %v1730
        %v1732 = vpop.f32.mrf.mxu0
        %1733 = vmatprep.mubr.bf16.mxu0 0
        %1734 = vmatmul.mubr.bf16.gmra.mxu0 %v1679
        %v1735 = vpop.f32.mrf.mxu0
        %v1736 = vadd.f32 %v1092, %v1735
        %v1737 = vpop.f32.mrf.mxu0
        %v1738 = vpop.f32.mrf.mxu0
        %v1739 = vadd.f32 %v1092, %v1738
        %v1740 = vpop.f32.mrf.mxu0
        %1741 = vmatprep.mubr.bf16.mxu0 0
        %1742 = vmatmul.mubr.bf16.gmra.mxu0 %v1681
        %v1743 = vpop.f32.mrf.mxu0
        %v1744 = vadd.f32 %v1092, %v1743
        %v1745 = vpop.f32.mrf.mxu0
        %v1746 = vpop.f32.mrf.mxu0
        %v1747 = vadd.f32 %v1092, %v1746
        %v1748 = vpop.f32.mrf.mxu0
        %1749 = vmatprep.mubr.bf16.mxu0 0
        %1750 = vmatmul.mubr.bf16.gmra.mxu0 %v1683
        %v1751 = vpop.f32.mrf.mxu0
        %v1752 = vadd.f32 %v1092, %v1751
        %v1753 = vpop.f32.mrf.mxu0
        %v1754 = vpop.f32.mrf.mxu0
        %v1755 = vadd.f32 %v1092, %v1754
        %v1756 = vpop.f32.mrf.mxu0
        %1757 = vmatprep.mubr.bf16.mxu0 0
        %1758 = vmatmul.mubr.bf16.gmra.mxu0 %v1685
        %v1759 = vpop.f32.mrf.mxu0
        %v1760 = vadd.f32 %v1092, %v1759
        %v1761 = vpop.f32.mrf.mxu0
        %v1762 = vpop.f32.mrf.mxu0
        %v1763 = vadd.f32 %v1092, %v1762
        %v1764 = vpop.f32.mrf.mxu0
        %1765 = vmatprep.mubr.bf16.mxu0 0
        %1766 = vmatmul.mubr.bf16.gmra.mxu0 %v1687
        %v1767 = vpop.f32.mrf.mxu0
        %v1768 = vadd.f32 %v1092, %v1767
        %v1769 = vpop.f32.mrf.mxu0
        %v1770 = vpop.f32.mrf.mxu0
        %v1771 = vadd.f32 %v1092, %v1770
        %v1772 = vpop.f32.mrf.mxu0
        %1773 = vmatprep.mubr.bf16.mxu0 0
        %1774 = vmatmul.mubr.bf16.gmra.mxu0 %v1689
        %v1775 = vpop.f32.mrf.mxu0
        %v1776 = vadd.f32 %v1092, %v1775
        %v1777 = vpop.f32.mrf.mxu0
        %v1778 = vpop.f32.mrf.mxu0
        %v1779 = vadd.f32 %v1092, %v1778
        %v1780 = vpop.f32.mrf.mxu0
        %1781 = vmatprep.mubr.bf16.mxu0 0
        %1782 = vmatmul.mubr.bf16.gmra.mxu0 %v1691
        %v1783 = vpop.f32.mrf.mxu0
        %v1784 = vadd.f32 %v1092, %v1783
        %v1785 = vpop.f32.mrf.mxu0
        %v1786 = vpop.f32.mrf.mxu0
        %v1787 = vadd.f32 %v1092, %v1786
        %v1788 = vpop.f32.mrf.mxu0
        %1789 = vdwg.mxu0
        %v1790 = vmax.f32 %v1728, 0.0
        %v1791 = vmax.f32 %v1731, 0.0
        %v1792 = vmax.f32 %v1736, 0.0
        %v1793 = vmax.f32 %v1739, 0.0
        %v1794 = vmax.f32 %v1744, 0.0
        %v1795 = vmax.f32 %v1747, 0.0
        %v1796 = vmax.f32 %v1752, 0.0
        %v1797 = vmax.f32 %v1755, 0.0
        %v1798 = vmax.f32 %v1760, 0.0
        %v1799 = vmax.f32 %v1763, 0.0
        %v1800 = vmax.f32 %v1768, 0.0
        %v1801 = vmax.f32 %v1771, 0.0
        %v1802 = vmax.f32 %v1776, 0.0
        %v1803 = vmax.f32 %v1779, 0.0
        %v1804 = vmax.f32 %v1784, 0.0
        %v1805 = vmax.f32 %v1787, 0.0
        %v1806 = vpack.c.bf16 %v1791, %v1790
        %v1807 = vpack.c.bf16 %v1793, %v1792
        %v1808 = vpack.c.bf16 %v1795, %v1794
        %v1809 = vpack.c.bf16 %v1797, %v1796
        %v1810 = vpack.c.bf16 %v1799, %v1798
        %v1811 = vpack.c.bf16 %v1801, %v1800
        %v1812 = vpack.c.bf16 %v1803, %v1802
        %v1813 = vpack.c.bf16 %v1805, %v1804
        %v1822 = vunpack.c.l.b16 %v1806
        %v1823 = vunpack.c.h.b16 %v1806
        %v1824 = vunpack.c.l.b16 %v1807
        %v1825 = vunpack.c.h.b16 %v1807
        %v1826 = vunpack.c.l.b16 %v1808
        %v1827 = vunpack.c.h.b16 %v1808
        %v1828 = vunpack.c.l.b16 %v1809
        %v1829 = vunpack.c.h.b16 %v1809
        %v1830 = vunpack.c.l.b16 %v1810
        %v1831 = vunpack.c.h.b16 %v1810
        %v1832 = vunpack.c.l.b16 %v1811
        %v1833 = vunpack.c.h.b16 %v1811
        %v1834 = vunpack.c.l.b16 %v1812
        %v1835 = vunpack.c.h.b16 %v1812
        %v1836 = vunpack.c.l.b16 %v1813
        %v1837 = vunpack.c.h.b16 %v1813
        %v1838 = vpack.c.b16 %v1822, %v1822
        %v1839 = vpack.c.b16 %v1823, %v1823
        %v1840 = vpack.c.b16 %v1824, %v1824
        %v1841 = vpack.c.b16 %v1825, %v1825
        %v1842 = vpack.c.b16 %v1826, %v1826
        %v1843 = vpack.c.b16 %v1827, %v1827
        %v1844 = vpack.c.b16 %v1828, %v1828
        %v1845 = vpack.c.b16 %v1829, %v1829
        %v1846 = vpack.c.b16 %v1830, %v1830
        %v1847 = vpack.c.b16 %v1831, %v1831
        %v1848 = vpack.c.b16 %v1832, %v1832
        %v1849 = vpack.c.b16 %v1833, %v1833
        %v1850 = vpack.c.b16 %v1834, %v1834
        %v1851 = vpack.c.b16 %v1835, %v1835
        %v1852 = vpack.c.b16 %v1836, %v1836
        %v1853 = vpack.c.b16 %v1837, %v1837
        %s1870 = scalar_lea.vmem %s173, 64 [#allocation2]
        %1871 = vst.msk [vmem:[%s1870] sm:$0xf] %vm1499, %v1838
        %1872 = vst.msk [vmem:[%s1870 + $0x4] sm:$0xf] %vm1499, %v1839
        %1873 = vst.msk [vmem:[%s1870 + $0x8] sm:$0xf] %vm1499, %v1840
        %1874 = vst.msk [vmem:[%s1870 + $0xc] sm:$0xf] %vm1499, %v1841
        %1875 = vst.msk [vmem:[%s1870 + $0x10] sm:$0xf] %vm1499, %v1842
        %1876 = vst.msk [vmem:[%s1870 + $0x14] sm:$0xf] %vm1499, %v1843
        %1877 = vst.msk [vmem:[%s1870 + $0x18] sm:$0xf] %vm1499, %v1844
        %1878 = vst.msk [vmem:[%s1870 + $0x1c] sm:$0xf] %vm1499, %v1845
        %1879 = vst.msk [vmem:[%s1870 + $0x20] sm:$0xf] %vm1499, %v1846
        %1880 = vst.msk [vmem:[%s1870 + $0x24] sm:$0xf] %vm1499, %v1847
        %1881 = vst.msk [vmem:[%s1870 + $0x28] sm:$0xf] %vm1499, %v1848
        %1882 = vst.msk [vmem:[%s1870 + $0x2c] sm:$0xf] %vm1499, %v1849
        %1883 = vst.msk [vmem:[%s1870 + $0x30] sm:$0xf] %vm1499, %v1850
        %1884 = vst.msk [vmem:[%s1870 + $0x34] sm:$0xf] %vm1499, %v1851
        %1885 = vst.msk [vmem:[%s1870 + $0x38] sm:$0xf] %vm1499, %v1852
        %1886 = vst.msk [vmem:[%s1870 + $0x3c] sm:$0xf] %vm1499, %v1853
        %1887 = vrot.lane.b32.xlu0 %v1214, 4
        %v1888 = vpop.permute.xlu0 %1887
        %1889 = vrot.lane.b32.xlu0 %v1215, 4
        %v1890 = vpop.permute.xlu0 %1889
        %1891 = vrot.lane.b32.xlu0 %v1216, 4
        %v1892 = vpop.permute.xlu0 %1891
        %1893 = vrot.lane.b32.xlu0 %v1217, 4
        %v1894 = vpop.permute.xlu0 %1893
        %1895 = vrot.lane.b32.xlu0 %v1218, 4
        %v1896 = vpop.permute.xlu0 %1895
        %1897 = vrot.lane.b32.xlu0 %v1219, 4
        %v1898 = vpop.permute.xlu0 %1897
        %1899 = vrot.lane.b32.xlu0 %v1220, 4
        %v1900 = vpop.permute.xlu0 %1899
        %1901 = vrot.lane.b32.xlu0 %v1221, 4
        %v1902 = vpop.permute.xlu0 %1901
        %v1903 = vunpack.c.l.b16 %v791
        %v1904 = vunpack.c.l.b16 %v792
        %v1905 = vunpack.c.l.b16 %v794
        %v1906 = vunpack.c.l.b16 %v795
        %v1907 = vunpack.c.l.b16 %v797
        %v1908 = vunpack.c.l.b16 %v798
        %v1909 = vunpack.c.l.b16 %v800
        %v1910 = vunpack.c.l.b16 %v801
        %v1911 = vunpack.c.l.b16 %v803
        %v1912 = vunpack.c.l.b16 %v804
        %v1913 = vunpack.c.l.b16 %v806
        %v1914 = vunpack.c.l.b16 %v807
        %v1915 = vunpack.c.l.b16 %v809
        %v1916 = vunpack.c.l.b16 %v810
        %v1917 = vunpack.c.l.b16 %v812
        %v1918 = vunpack.c.l.b16 %v813
        %v1919 = vpack.c.b16 %v1904, %v1903
        %v1920 = vpack.c.b16 %v1906, %v1905
        %v1921 = vpack.c.b16 %v1908, %v1907
        %v1922 = vpack.c.b16 %v1910, %v1909
        %v1923 = vpack.c.b16 %v1912, %v1911
        %v1924 = vpack.c.b16 %v1914, %v1913
        %v1925 = vpack.c.b16 %v1916, %v1915
        %v1926 = vpack.c.b16 %v1918, %v1917
        %1927 = vrot.lane.b32.xlu0 %v1919, 8
        %v1928 = vpop.permute.xlu0 %1927
        %1929 = vrot.lane.b32.xlu0 %v1920, 8
        %v1930 = vpop.permute.xlu0 %1929
        %1931 = vrot.lane.b32.xlu0 %v1921, 8
        %v1932 = vpop.permute.xlu0 %1931
        %1933 = vrot.lane.b32.xlu0 %v1922, 8
        %v1934 = vpop.permute.xlu0 %1933
        %1935 = vrot.lane.b32.xlu0 %v1923, 8
        %v1936 = vpop.permute.xlu0 %1935
        %1937 = vrot.lane.b32.xlu0 %v1924, 8
        %v1938 = vpop.permute.xlu0 %1937
        %1939 = vrot.lane.b32.xlu0 %v1925, 8
        %v1940 = vpop.permute.xlu0 %1939
        %1941 = vrot.lane.b32.xlu0 %v1926, 8
        %v1942 = vpop.permute.xlu0 %1941
        %v1943 = vunpack.c.l.b16 %v828
        %v1944 = vunpack.c.l.b16 %v838
        %v1945 = vunpack.c.l.b16 %v852
        %v1946 = vunpack.c.l.b16 %v862
        %v1947 = vunpack.c.l.b16 %v876
        %v1948 = vunpack.c.l.b16 %v886
        %v1949 = vunpack.c.l.b16 %v900
        %v1950 = vunpack.c.l.b16 %v910
        %v1951 = vunpack.c.l.b16 %v924
        %v1952 = vunpack.c.l.b16 %v934
        %v1953 = vunpack.c.l.b16 %v948
        %v1954 = vunpack.c.l.b16 %v958
        %v1955 = vunpack.c.l.b16 %v972
        %v1956 = vunpack.c.l.b16 %v982
        %v1957 = vunpack.c.l.b16 %v996
        %v1958 = vunpack.c.l.b16 %v1006
        %v1959 = vpack.c.b16 %v1944, %v1943
        %v1960 = vpack.c.b16 %v1946, %v1945
        %v1961 = vpack.c.b16 %v1948, %v1947
        %v1962 = vpack.c.b16 %v1950, %v1949
        %v1963 = vpack.c.b16 %v1952, %v1951
        %v1964 = vpack.c.b16 %v1954, %v1953
        %v1965 = vpack.c.b16 %v1956, %v1955
        %v1966 = vpack.c.b16 %v1958, %v1957
        %1967 = vrot.lane.b32.xlu0 %v1959, 12
        %v1968 = vpop.permute.xlu0 %1967
        %1969 = vrot.lane.b32.xlu0 %v1960, 12
        %v1970 = vpop.permute.xlu0 %1969
        %1971 = vrot.lane.b32.xlu0 %v1961, 12
        %v1972 = vpop.permute.xlu0 %1971
        %1973 = vrot.lane.b32.xlu0 %v1962, 12
        %v1974 = vpop.permute.xlu0 %1973
        %1975 = vrot.lane.b32.xlu0 %v1963, 12
        %v1976 = vpop.permute.xlu0 %1975
        %1977 = vrot.lane.b32.xlu0 %v1964, 12
        %v1978 = vpop.permute.xlu0 %1977
        %1979 = vrot.lane.b32.xlu0 %v1965, 12
        %v1980 = vpop.permute.xlu0 %1979
        %1981 = vrot.lane.b32.xlu0 %v1966, 12
        %v1982 = vpop.permute.xlu0 %1981
        %v1985 = vsel %vm1238, %v1174, %v1888
        %v1988 = vsel %vm1238, %v1175, %v1890
        %v1991 = vsel %vm1238, %v1176, %v1892
        %v1994 = vsel %vm1238, %v1177, %v1894
        %v1997 = vsel %vm1238, %v1178, %v1896
        %v2000 = vsel %vm1238, %v1179, %v1898
        %v2003 = vsel %vm1238, %v1180, %v1900
        %v2006 = vsel %vm1238, %v1181, %v1902
        %v2008 = vsel %vm1263, %v1985, %v1928
        %v2010 = vsel %vm1263, %v1988, %v1930
        %v2012 = vsel %vm1263, %v1991, %v1932
        %v2014 = vsel %vm1263, %v1994, %v1934
        %v2016 = vsel %vm1263, %v1997, %v1936
        %v2018 = vsel %vm1263, %v2000, %v1938
        %v2020 = vsel %vm1263, %v2003, %v1940
        %v2022 = vsel %vm1263, %v2006, %v1942
        %v2024 = vsel %vm1280, %v2008, %v1968
        %v2026 = vsel %vm1280, %v2010, %v1970
        %v2028 = vsel %vm1280, %v2012, %v1972
        %v2030 = vsel %vm1280, %v2014, %v1974
        %v2032 = vsel %vm1280, %v2016, %v1976
        %v2034 = vsel %vm1280, %v2018, %v1978
        %v2036 = vsel %vm1280, %v2020, %v1980
        %v2038 = vsel %vm1280, %v2022, %v1982
        %s2039 = scalar_lea.vmem %s1, 16
        %v2040 = vld [vmem:[%s2039] sm:$0xf]
        %v2041 = vld [vmem:[%s2039 + $0x4] sm:$0xf]
        %v2044 = vunpack.c.l.b16 %v2040
        %v2045 = vunpack.c.l.b16 %v2041
        %v2046 = vpack.c.b16 %v2045, %v2044
        %v2048 = vsel %vm1305, %v2024, 0
        %v2050 = vsel %vm1305, %v2026, 0
        %v2052 = vsel %vm1305, %v2028, 0
        %v2054 = vsel %vm1305, %v2030, 0
        %v2056 = vsel %vm1305, %v2032, 0
        %v2058 = vsel %vm1305, %v2034, 0
        %v2060 = vsel %vm1305, %v2036, 0
        %v2062 = vsel %vm1305, %v2038, 0
        %2064 = vmatprep.subr.bf16.mxu0 0
        %2065 = vmatpush1.bf16.msra.mxu0 0
        %2066 = vmatprep.subr.bf16.mxu0 0
        %2067 = vmatpush1.bf16.msra.mxu0 0
        %2068 = vmatprep.subr.bf16.mxu0 0
        %2069 = vmatpush1.bf16.msra.mxu0 0
        %2070 = vmatprep.subr.bf16.mxu0 0
        %2071 = vmatpush1.bf16.msra.mxu0 0
        %2072 = vmatprep.subr.bf16.mxu0 0
        %2073 = vmatpush1.bf16.msra.mxu0 0
        %2074 = vmatprep.subr.bf16.mxu0 0
        %2075 = vmatpush1.bf16.msra.mxu0 0
        %2076 = vmatprep.subr.bf16.mxu0 0
        %2077 = vmatpush1.bf16.msra.mxu0 0
        %2078 = vmatprep.subr.bf16.mxu0 0
        %2079 = vmatpush1.bf16.msra.mxu0 %v2046
        %2080 = vmatprep.subr.bf16.mxu0 0
        %2081 = vmatpush2.bf16.msra.mxu0 0
        %2082 = vmatprep.subr.bf16.mxu0 0
        %2083 = vmatpush2.bf16.msra.mxu0 0
        %2084 = vmatprep.subr.bf16.mxu0 0
        %2085 = vmatpush2.bf16.msra.mxu0 0
        %2086 = vmatprep.subr.bf16.mxu0 0
        %2087 = vmatpush2.bf16.msra.mxu0 0
        %2088 = vmatprep.subr.bf16.mxu0 0
        %2089 = vmatpush2.bf16.msra.mxu0 0
        %2090 = vmatprep.subr.bf16.mxu0 0
        %2091 = vmatpush2.bf16.msra.mxu0 0
        %2092 = vmatprep.subr.bf16.mxu0 0
        %2093 = vmatpush2.bf16.msra.mxu0 0
        %2094 = vmatprep.subr.bf16.mxu0 0
        %2095 = vmatpush2.bf16.msra.mxu0 0
        %2096 = vmatprep.mubr.bf16.mxu0 0
        %2097 = vmatmul.mubr.bf16.gmra.mxu0 %v2048
        %v2098 = vpop.f32.mrf.mxu0
        %v2099 = vadd.f32 %v1092, %v2098
        %v2100 = vpop.f32.mrf.mxu0
        %v2101 = vpop.f32.mrf.mxu0
        %v2102 = vadd.f32 %v1092, %v2101
        %v2103 = vpop.f32.mrf.mxu0
        %2104 = vmatprep.mubr.bf16.mxu0 0
        %2105 = vmatmul.mubr.bf16.gmra.mxu0 %v2050
        %v2106 = vpop.f32.mrf.mxu0
        %v2107 = vadd.f32 %v1092, %v2106
        %v2108 = vpop.f32.mrf.mxu0
        %v2109 = vpop.f32.mrf.mxu0
        %v2110 = vadd.f32 %v1092, %v2109
        %v2111 = vpop.f32.mrf.mxu0
        %2112 = vmatprep.mubr.bf16.mxu0 0
        %2113 = vmatmul.mubr.bf16.gmra.mxu0 %v2052
        %v2114 = vpop.f32.mrf.mxu0
        %v2115 = vadd.f32 %v1092, %v2114
        %v2116 = vpop.f32.mrf.mxu0
        %v2117 = vpop.f32.mrf.mxu0
        %v2118 = vadd.f32 %v1092, %v2117
        %v2119 = vpop.f32.mrf.mxu0
        %2120 = vmatprep.mubr.bf16.mxu0 0
        %2121 = vmatmul.mubr.bf16.gmra.mxu0 %v2054
        %v2122 = vpop.f32.mrf.mxu0
        %v2123 = vadd.f32 %v1092, %v2122
        %v2124 = vpop.f32.mrf.mxu0
        %v2125 = vpop.f32.mrf.mxu0
        %v2126 = vadd.f32 %v1092, %v2125
        %v2127 = vpop.f32.mrf.mxu0
        %2128 = vmatprep.mubr.bf16.mxu0 0
        %2129 = vmatmul.mubr.bf16.gmra.mxu0 %v2056
        %v2130 = vpop.f32.mrf.mxu0
        %v2131 = vadd.f32 %v1092, %v2130
        %v2132 = vpop.f32.mrf.mxu0
        %v2133 = vpop.f32.mrf.mxu0
        %v2134 = vadd.f32 %v1092, %v2133
        %v2135 = vpop.f32.mrf.mxu0
        %2136 = vmatprep.mubr.bf16.mxu0 0
        %2137 = vmatmul.mubr.bf16.gmra.mxu0 %v2058
        %v2138 = vpop.f32.mrf.mxu0
        %v2139 = vadd.f32 %v1092, %v2138
        %v2140 = vpop.f32.mrf.mxu0
        %v2141 = vpop.f32.mrf.mxu0
        %v2142 = vadd.f32 %v1092, %v2141
        %v2143 = vpop.f32.mrf.mxu0
        %2144 = vmatprep.mubr.bf16.mxu0 0
        %2145 = vmatmul.mubr.bf16.gmra.mxu0 %v2060
        %v2146 = vpop.f32.mrf.mxu0
        %v2147 = vadd.f32 %v1092, %v2146
        %v2148 = vpop.f32.mrf.mxu0
        %v2149 = vpop.f32.mrf.mxu0
        %v2150 = vadd.f32 %v1092, %v2149
        %v2151 = vpop.f32.mrf.mxu0
        %2152 = vmatprep.mubr.bf16.mxu0 0
        %2153 = vmatmul.mubr.bf16.gmra.mxu0 %v2062
        %v2154 = vpop.f32.mrf.mxu0
        %v2155 = vadd.f32 %v1092, %v2154
        %v2156 = vpop.f32.mrf.mxu0
        %v2157 = vpop.f32.mrf.mxu0
        %v2158 = vadd.f32 %v1092, %v2157
        %v2159 = vpop.f32.mrf.mxu0
        %2160 = vdwg.mxu0
        %v2161 = vmax.f32 %v2099, 0.0
        %v2162 = vmax.f32 %v2102, 0.0
        %v2163 = vmax.f32 %v2107, 0.0
        %v2164 = vmax.f32 %v2110, 0.0
        %v2165 = vmax.f32 %v2115, 0.0
        %v2166 = vmax.f32 %v2118, 0.0
        %v2167 = vmax.f32 %v2123, 0.0
        %v2168 = vmax.f32 %v2126, 0.0
        %v2169 = vmax.f32 %v2131, 0.0
        %v2170 = vmax.f32 %v2134, 0.0
        %v2171 = vmax.f32 %v2139, 0.0
        %v2172 = vmax.f32 %v2142, 0.0
        %v2173 = vmax.f32 %v2147, 0.0
        %v2174 = vmax.f32 %v2150, 0.0
        %v2175 = vmax.f32 %v2155, 0.0
        %v2176 = vmax.f32 %v2158, 0.0
        %v2177 = vpack.c.bf16 %v2162, %v2161
        %v2178 = vpack.c.bf16 %v2164, %v2163
        %v2179 = vpack.c.bf16 %v2166, %v2165
        %v2180 = vpack.c.bf16 %v2168, %v2167
        %v2181 = vpack.c.bf16 %v2170, %v2169
        %v2182 = vpack.c.bf16 %v2172, %v2171
        %v2183 = vpack.c.bf16 %v2174, %v2173
        %v2184 = vpack.c.bf16 %v2176, %v2175
        %v2193 = vunpack.c.l.b16 %v2177
        %v2194 = vunpack.c.h.b16 %v2177
        %v2195 = vunpack.c.l.b16 %v2178
        %v2196 = vunpack.c.h.b16 %v2178
        %v2197 = vunpack.c.l.b16 %v2179
        %v2198 = vunpack.c.h.b16 %v2179
        %v2199 = vunpack.c.l.b16 %v2180
        %v2200 = vunpack.c.h.b16 %v2180
        %v2201 = vunpack.c.l.b16 %v2181
        %v2202 = vunpack.c.h.b16 %v2181
        %v2203 = vunpack.c.l.b16 %v2182
        %v2204 = vunpack.c.h.b16 %v2182
        %v2205 = vunpack.c.l.b16 %v2183
        %v2206 = vunpack.c.h.b16 %v2183
        %v2207 = vunpack.c.l.b16 %v2184
        %v2208 = vunpack.c.h.b16 %v2184
        %v2209 = vpack.c.b16 %v2193, %v2193
        %v2210 = vpack.c.b16 %v2194, %v2194
        %v2211 = vpack.c.b16 %v2195, %v2195
        %v2212 = vpack.c.b16 %v2196, %v2196
        %v2213 = vpack.c.b16 %v2197, %v2197
        %v2214 = vpack.c.b16 %v2198, %v2198
        %v2215 = vpack.c.b16 %v2199, %v2199
        %v2216 = vpack.c.b16 %v2200, %v2200
        %v2217 = vpack.c.b16 %v2201, %v2201
        %v2218 = vpack.c.b16 %v2202, %v2202
        %v2219 = vpack.c.b16 %v2203, %v2203
        %v2220 = vpack.c.b16 %v2204, %v2204
        %v2221 = vpack.c.b16 %v2205, %v2205
        %v2222 = vpack.c.b16 %v2206, %v2206
        %v2223 = vpack.c.b16 %v2207, %v2207
        %v2224 = vpack.c.b16 %v2208, %v2208
        %s2241 = scalar_lea.vmem %s173, 128 [#allocation2]
        %2242 = vst.msk [vmem:[%s2241] sm:$0xf] %vm1499, %v2209
        %2243 = vst.msk [vmem:[%s2241 + $0x4] sm:$0xf] %vm1499, %v2210
        %2244 = vst.msk [vmem:[%s2241 + $0x8] sm:$0xf] %vm1499, %v2211
        %2245 = vst.msk [vmem:[%s2241 + $0xc] sm:$0xf] %vm1499, %v2212
        %2246 = vst.msk [vmem:[%s2241 + $0x10] sm:$0xf] %vm1499, %v2213
        %2247 = vst.msk [vmem:[%s2241 + $0x14] sm:$0xf] %vm1499, %v2214
        %2248 = vst.msk [vmem:[%s2241 + $0x18] sm:$0xf] %vm1499, %v2215
        %2249 = vst.msk [vmem:[%s2241 + $0x1c] sm:$0xf] %vm1499, %v2216
        %2250 = vst.msk [vmem:[%s2241 + $0x20] sm:$0xf] %vm1499, %v2217
        %2251 = vst.msk [vmem:[%s2241 + $0x24] sm:$0xf] %vm1499, %v2218
        %2252 = vst.msk [vmem:[%s2241 + $0x28] sm:$0xf] %vm1499, %v2219
        %2253 = vst.msk [vmem:[%s2241 + $0x2c] sm:$0xf] %vm1499, %v2220
        %2254 = vst.msk [vmem:[%s2241 + $0x30] sm:$0xf] %vm1499, %v2221
        %2255 = vst.msk [vmem:[%s2241 + $0x34] sm:$0xf] %vm1499, %v2222
        %2256 = vst.msk [vmem:[%s2241 + $0x38] sm:$0xf] %vm1499, %v2223
        %2257 = vst.msk [vmem:[%s2241 + $0x3c] sm:$0xf] %vm1499, %v2224
        %2258 = vrot.lane.b32.xlu0 %v1588, 4
        %v2259 = vpop.permute.xlu0 %2258
        %2260 = vrot.lane.b32.xlu0 %v1589, 4
        %v2261 = vpop.permute.xlu0 %2260
        %2262 = vrot.lane.b32.xlu0 %v1590, 4
        %v2263 = vpop.permute.xlu0 %2262
        %2264 = vrot.lane.b32.xlu0 %v1591, 4
        %v2265 = vpop.permute.xlu0 %2264
        %2266 = vrot.lane.b32.xlu0 %v1592, 4
        %v2267 = vpop.permute.xlu0 %2266
        %2268 = vrot.lane.b32.xlu0 %v1593, 4
        %v2269 = vpop.permute.xlu0 %2268
        %2270 = vrot.lane.b32.xlu0 %v1594, 4
        %v2271 = vpop.permute.xlu0 %2270
        %2272 = vrot.lane.b32.xlu0 %v1595, 4
        %v2273 = vpop.permute.xlu0 %2272
        %2274 = vrot.lane.b32.xlu0 %v1959, 8
        %v2275 = vpop.permute.xlu0 %2274
        %2276 = vrot.lane.b32.xlu0 %v1960, 8
        %v2277 = vpop.permute.xlu0 %2276
        %2278 = vrot.lane.b32.xlu0 %v1961, 8
        %v2279 = vpop.permute.xlu0 %2278
        %2280 = vrot.lane.b32.xlu0 %v1962, 8
        %v2281 = vpop.permute.xlu0 %2280
        %2282 = vrot.lane.b32.xlu0 %v1963, 8
        %v2283 = vpop.permute.xlu0 %2282
        %2284 = vrot.lane.b32.xlu0 %v1964, 8
        %v2285 = vpop.permute.xlu0 %2284
        %2286 = vrot.lane.b32.xlu0 %v1965, 8
        %v2287 = vpop.permute.xlu0 %2286
        %2288 = vrot.lane.b32.xlu0 %v1966, 8
        %v2289 = vpop.permute.xlu0 %2288
        %v2290 = vunpack.c.l.b16 %v1034
        %v2291 = vunpack.c.l.b16 %v1037
        %v2292 = vunpack.c.l.b16 %v1041
        %v2293 = vunpack.c.l.b16 %v1044
        %v2294 = vunpack.c.l.b16 %v1048
        %v2295 = vunpack.c.l.b16 %v1051
        %v2296 = vunpack.c.l.b16 %v1055
        %v2297 = vunpack.c.l.b16 %v1058
        %v2298 = vunpack.c.l.b16 %v1062
        %v2299 = vunpack.c.l.b16 %v1065
        %v2300 = vunpack.c.l.b16 %v1069
        %v2301 = vunpack.c.l.b16 %v1072
        %v2302 = vunpack.c.l.b16 %v1076
        %v2303 = vunpack.c.l.b16 %v1079
        %v2304 = vunpack.c.l.b16 %v1083
        %v2305 = vunpack.c.l.b16 %v1086
        %v2306 = vpack.c.b16 %v2291, %v2290
        %v2307 = vpack.c.b16 %v2293, %v2292
        %v2308 = vpack.c.b16 %v2295, %v2294
        %v2309 = vpack.c.b16 %v2297, %v2296
        %v2310 = vpack.c.b16 %v2299, %v2298
        %v2311 = vpack.c.b16 %v2301, %v2300
        %v2312 = vpack.c.b16 %v2303, %v2302
        %v2313 = vpack.c.b16 %v2305, %v2304
        %2314 = vrot.lane.b32.xlu0 %v2306, 12
        %v2315 = vpop.permute.xlu0 %2314
        %2316 = vrot.lane.b32.xlu0 %v2307, 12
        %v2317 = vpop.permute.xlu0 %2316
        %2318 = vrot.lane.b32.xlu0 %v2308, 12
        %v2319 = vpop.permute.xlu0 %2318
        %2320 = vrot.lane.b32.xlu0 %v2309, 12
        %v2321 = vpop.permute.xlu0 %2320
        %2322 = vrot.lane.b32.xlu0 %v2310, 12
        %v2323 = vpop.permute.xlu0 %2322
        %2324 = vrot.lane.b32.xlu0 %v2311, 12
        %v2325 = vpop.permute.xlu0 %2324
        %2326 = vrot.lane.b32.xlu0 %v2312, 12
        %v2327 = vpop.permute.xlu0 %2326
        %2328 = vrot.lane.b32.xlu0 %v2313, 12
        %v2329 = vpop.permute.xlu0 %2328
        %v2332 = vsel %vm1238, %v1214, %v2259
        %v2335 = vsel %vm1238, %v1215, %v2261
        %v2338 = vsel %vm1238, %v1216, %v2263
        %v2341 = vsel %vm1238, %v1217, %v2265
        %v2344 = vsel %vm1238, %v1218, %v2267
        %v2347 = vsel %vm1238, %v1219, %v2269
        %v2350 = vsel %vm1238, %v1220, %v2271
        %v2353 = vsel %vm1238, %v1221, %v2273
        %v2355 = vsel %vm1263, %v2332, %v2275
        %v2357 = vsel %vm1263, %v2335, %v2277
        %v2359 = vsel %vm1263, %v2338, %v2279
        %v2361 = vsel %vm1263, %v2341, %v2281
        %v2363 = vsel %vm1263, %v2344, %v2283
        %v2365 = vsel %vm1263, %v2347, %v2285
        %v2367 = vsel %vm1263, %v2350, %v2287
        %v2369 = vsel %vm1263, %v2353, %v2289
        %v2371 = vsel %vm1280, %v2355, %v2315
        %v2373 = vsel %vm1280, %v2357, %v2317
        %v2375 = vsel %vm1280, %v2359, %v2319
        %v2377 = vsel %vm1280, %v2361, %v2321
        %v2379 = vsel %vm1280, %v2363, %v2323
        %v2381 = vsel %vm1280, %v2365, %v2325
        %v2383 = vsel %vm1280, %v2367, %v2327
        %v2385 = vsel %vm1280, %v2369, %v2329
        %s2386 = scalar_lea.vmem %s1, 24
        %v2387 = vld [vmem:[%s2386] sm:$0xf]
        %v2388 = vld [vmem:[%s2386 + $0x4] sm:$0xf]
        %v2391 = vunpack.c.l.b16 %v2387
        %v2392 = vunpack.c.l.b16 %v2388
        %v2393 = vpack.c.b16 %v2392, %v2391
        %v2395 = vsel %vm1305, %v2371, 0
        %v2397 = vsel %vm1305, %v2373, 0
        %v2399 = vsel %vm1305, %v2375, 0
        %v2401 = vsel %vm1305, %v2377, 0
        %v2403 = vsel %vm1305, %v2379, 0
        %v2405 = vsel %vm1305, %v2381, 0
        %v2407 = vsel %vm1305, %v2383, 0
        %v2409 = vsel %vm1305, %v2385, 0
        %2411 = vmatprep.subr.bf16.mxu0 0
        %2412 = vmatpush1.bf16.msra.mxu0 0
        %2413 = vmatprep.subr.bf16.mxu0 0
        %2414 = vmatpush1.bf16.msra.mxu0 0
        %2415 = vmatprep.subr.bf16.mxu0 0
        %2416 = vmatpush1.bf16.msra.mxu0 0
        %2417 = vmatprep.subr.bf16.mxu0 0
        %2418 = vmatpush1.bf16.msra.mxu0 0
        %2419 = vmatprep.subr.bf16.mxu0 0
        %2420 = vmatpush1.bf16.msra.mxu0 0
        %2421 = vmatprep.subr.bf16.mxu0 0
        %2422 = vmatpush1.bf16.msra.mxu0 0
        %2423 = vmatprep.subr.bf16.mxu0 0
        %2424 = vmatpush1.bf16.msra.mxu0 0
        %2425 = vmatprep.subr.bf16.mxu0 0
        %2426 = vmatpush1.bf16.msra.mxu0 %v2393
        %2427 = vmatprep.subr.bf16.mxu0 0
        %2428 = vmatpush2.bf16.msra.mxu0 0
        %2429 = vmatprep.subr.bf16.mxu0 0
        %2430 = vmatpush2.bf16.msra.mxu0 0
        %2431 = vmatprep.subr.bf16.mxu0 0
        %2432 = vmatpush2.bf16.msra.mxu0 0
        %2433 = vmatprep.subr.bf16.mxu0 0
        %2434 = vmatpush2.bf16.msra.mxu0 0
        %2435 = vmatprep.subr.bf16.mxu0 0
        %2436 = vmatpush2.bf16.msra.mxu0 0
        %2437 = vmatprep.subr.bf16.mxu0 0
        %2438 = vmatpush2.bf16.msra.mxu0 0
        %2439 = vmatprep.subr.bf16.mxu0 0
        %2440 = vmatpush2.bf16.msra.mxu0 0
        %2441 = vmatprep.subr.bf16.mxu0 0
        %2442 = vmatpush2.bf16.msra.mxu0 0
        %2443 = vmatprep.mubr.bf16.mxu0 0
        %2444 = vmatmul.mubr.bf16.gmra.mxu0 %v2395
        %v2445 = vpop.f32.mrf.mxu0
        %v2446 = vadd.f32 %v1092, %v2445
        %v2447 = vpop.f32.mrf.mxu0
        %v2448 = vpop.f32.mrf.mxu0
        %v2449 = vadd.f32 %v1092, %v2448
        %v2450 = vpop.f32.mrf.mxu0
        %2451 = vmatprep.mubr.bf16.mxu0 0
        %2452 = vmatmul.mubr.bf16.gmra.mxu0 %v2397
        %v2453 = vpop.f32.mrf.mxu0
        %v2454 = vadd.f32 %v1092, %v2453
        %v2455 = vpop.f32.mrf.mxu0
        %v2456 = vpop.f32.mrf.mxu0
        %v2457 = vadd.f32 %v1092, %v2456
        %v2458 = vpop.f32.mrf.mxu0
        %2459 = vmatprep.mubr.bf16.mxu0 0
        %2460 = vmatmul.mubr.bf16.gmra.mxu0 %v2399
        %v2461 = vpop.f32.mrf.mxu0
        %v2462 = vadd.f32 %v1092, %v2461
        %v2463 = vpop.f32.mrf.mxu0
        %v2464 = vpop.f32.mrf.mxu0
        %v2465 = vadd.f32 %v1092, %v2464
        %v2466 = vpop.f32.mrf.mxu0
        %2467 = vmatprep.mubr.bf16.mxu0 0
        %2468 = vmatmul.mubr.bf16.gmra.mxu0 %v2401
        %v2469 = vpop.f32.mrf.mxu0
        %v2470 = vadd.f32 %v1092, %v2469
        %v2471 = vpop.f32.mrf.mxu0
        %v2472 = vpop.f32.mrf.mxu0
        %v2473 = vadd.f32 %v1092, %v2472
        %v2474 = vpop.f32.mrf.mxu0
        %2475 = vmatprep.mubr.bf16.mxu0 0
        %2476 = vmatmul.mubr.bf16.gmra.mxu0 %v2403
        %v2477 = vpop.f32.mrf.mxu0
        %v2478 = vadd.f32 %v1092, %v2477
        %v2479 = vpop.f32.mrf.mxu0
        %v2480 = vpop.f32.mrf.mxu0
        %v2481 = vadd.f32 %v1092, %v2480
        %v2482 = vpop.f32.mrf.mxu0
        %2483 = vmatprep.mubr.bf16.mxu0 0
        %2484 = vmatmul.mubr.bf16.gmra.mxu0 %v2405
        %v2485 = vpop.f32.mrf.mxu0
        %v2486 = vadd.f32 %v1092, %v2485
        %v2487 = vpop.f32.mrf.mxu0
        %v2488 = vpop.f32.mrf.mxu0
        %v2489 = vadd.f32 %v1092, %v2488
        %v2490 = vpop.f32.mrf.mxu0
        %2491 = vmatprep.mubr.bf16.mxu0 0
        %2492 = vmatmul.mubr.bf16.gmra.mxu0 %v2407
        %v2493 = vpop.f32.mrf.mxu0
        %v2494 = vadd.f32 %v1092, %v2493
        %v2495 = vpop.f32.mrf.mxu0
        %v2496 = vpop.f32.mrf.mxu0
        %v2497 = vadd.f32 %v1092, %v2496
        %v2498 = vpop.f32.mrf.mxu0
        %2499 = vmatprep.mubr.bf16.mxu0 0
        %2500 = vmatmul.mubr.bf16.gmra.mxu0 %v2409
        %v2501 = vpop.f32.mrf.mxu0
        %v2502 = vadd.f32 %v1092, %v2501
        %v2503 = vpop.f32.mrf.mxu0
        %v2504 = vpop.f32.mrf.mxu0
        %v2505 = vadd.f32 %v1092, %v2504
        %v2506 = vpop.f32.mrf.mxu0
        %2507 = vdwg.mxu0
        %v2508 = vmax.f32 %v2446, 0.0
        %v2509 = vmax.f32 %v2449, 0.0
        %v2510 = vmax.f32 %v2454, 0.0
        %v2511 = vmax.f32 %v2457, 0.0
        %v2512 = vmax.f32 %v2462, 0.0
        %v2513 = vmax.f32 %v2465, 0.0
        %v2514 = vmax.f32 %v2470, 0.0
        %v2515 = vmax.f32 %v2473, 0.0
        %v2516 = vmax.f32 %v2478, 0.0
        %v2517 = vmax.f32 %v2481, 0.0
        %v2518 = vmax.f32 %v2486, 0.0
        %v2519 = vmax.f32 %v2489, 0.0
        %v2520 = vmax.f32 %v2494, 0.0
        %v2521 = vmax.f32 %v2497, 0.0
        %v2522 = vmax.f32 %v2502, 0.0
        %v2523 = vmax.f32 %v2505, 0.0
        %v2524 = vpack.c.bf16 %v2509, %v2508
        %v2525 = vpack.c.bf16 %v2511, %v2510
        %v2526 = vpack.c.bf16 %v2513, %v2512
        %v2527 = vpack.c.bf16 %v2515, %v2514
        %v2528 = vpack.c.bf16 %v2517, %v2516
        %v2529 = vpack.c.bf16 %v2519, %v2518
        %v2530 = vpack.c.bf16 %v2521, %v2520
        %v2531 = vpack.c.bf16 %v2523, %v2522
        %v2540 = vunpack.c.l.b16 %v2524
        %v2541 = vunpack.c.h.b16 %v2524
        %v2542 = vunpack.c.l.b16 %v2525
        %v2543 = vunpack.c.h.b16 %v2525
        %v2544 = vunpack.c.l.b16 %v2526
        %v2545 = vunpack.c.h.b16 %v2526
        %v2546 = vunpack.c.l.b16 %v2527
        %v2547 = vunpack.c.h.b16 %v2527
        %v2548 = vunpack.c.l.b16 %v2528
        %v2549 = vunpack.c.h.b16 %v2528
        %v2550 = vunpack.c.l.b16 %v2529
        %v2551 = vunpack.c.h.b16 %v2529
        %v2552 = vunpack.c.l.b16 %v2530
        %v2553 = vunpack.c.h.b16 %v2530
        %v2554 = vunpack.c.l.b16 %v2531
        %v2555 = vunpack.c.h.b16 %v2531
        %v2556 = vpack.c.b16 %v2540, %v2540
        %v2557 = vpack.c.b16 %v2541, %v2541
        %v2558 = vpack.c.b16 %v2542, %v2542
        %v2559 = vpack.c.b16 %v2543, %v2543
        %v2560 = vpack.c.b16 %v2544, %v2544
        %v2561 = vpack.c.b16 %v2545, %v2545
        %v2562 = vpack.c.b16 %v2546, %v2546
        %v2563 = vpack.c.b16 %v2547, %v2547
        %v2564 = vpack.c.b16 %v2548, %v2548
        %v2565 = vpack.c.b16 %v2549, %v2549
        %v2566 = vpack.c.b16 %v2550, %v2550
        %v2567 = vpack.c.b16 %v2551, %v2551
        %v2568 = vpack.c.b16 %v2552, %v2552
        %v2569 = vpack.c.b16 %v2553, %v2553
        %v2570 = vpack.c.b16 %v2554, %v2554
        %v2571 = vpack.c.b16 %v2555, %v2555
        %s2588 = scalar_lea.vmem %s173, 192 [#allocation2]
        %2589 = vst.msk [vmem:[%s2588] sm:$0xf] %vm1499, %v2556
        %2590 = vst.msk [vmem:[%s2588 + $0x4] sm:$0xf] %vm1499, %v2557
        %2591 = vst.msk [vmem:[%s2588 + $0x8] sm:$0xf] %vm1499, %v2558
        %2592 = vst.msk [vmem:[%s2588 + $0xc] sm:$0xf] %vm1499, %v2559
        %2593 = vst.msk [vmem:[%s2588 + $0x10] sm:$0xf] %vm1499, %v2560
        %2594 = vst.msk [vmem:[%s2588 + $0x14] sm:$0xf] %vm1499, %v2561
        %2595 = vst.msk [vmem:[%s2588 + $0x18] sm:$0xf] %vm1499, %v2562
        %2596 = vst.msk [vmem:[%s2588 + $0x1c] sm:$0xf] %vm1499, %v2563
        %2597 = vst.msk [vmem:[%s2588 + $0x20] sm:$0xf] %vm1499, %v2564
        %2598 = vst.msk [vmem:[%s2588 + $0x24] sm:$0xf] %vm1499, %v2565
        %2599 = vst.msk [vmem:[%s2588 + $0x28] sm:$0xf] %vm1499, %v2566
        %2600 = vst.msk [vmem:[%s2588 + $0x2c] sm:$0xf] %vm1499, %v2567
        %2601 = vst.msk [vmem:[%s2588 + $0x30] sm:$0xf] %vm1499, %v2568
        %2602 = vst.msk [vmem:[%s2588 + $0x34] sm:$0xf] %vm1499, %v2569
        %2603 = vst.msk [vmem:[%s2588 + $0x38] sm:$0xf] %vm1499, %v2570
        %2604 = vst.msk [vmem:[%s2588 + $0x3c] sm:$0xf] %vm1499, %v2571
        %s2605 = sand.u32 %s104, 1
        %s2606 = sand.u32 %s104, 1
        %s2607 = smul.addr %s2606, 256
        %s2608 = scalar_lea.vmem [#allocation2], %s2607
        // Predicated region
        $region33: #{tpu_custom_call.1} parent=31 // pred_check
          %p2609 = pneg %p114
        $region34: #{tpu_custom_call.1} parent=31 // pred_check_branch
          %2611 = sbr.rel (%p2609) target = $region36
        $region35: #{tpu_custom_call.1} parent=31 // pred_region
          %s2612 = smul.u32 16, %s19
          %s2613 = smul.addr %s18, 128
          %s2614 = sadd.s32 %s2612, %s2613
          %s2615 = smul.addr %s2614, 4
          %s2616 = scalar_lea.vmem %s3, %s2615
          // Predicated region
          $region37: #{tpu_custom_call.1} parent=35 // pred_check
            _
          $region38: #{tpu_custom_call.1} parent=35 // pred_check_branch
            %2618 = sbr.rel (0) target = $region40
          $region39: #{tpu_custom_call.1} parent=35 // pred_region
            // Predicated region
            $region41: #{tpu_custom_call.1} parent=39 // pred_check
              _
            $region42: #{tpu_custom_call.1} parent=39 // pred_check_branch
              %2620 = sbr.rel target = $region44
            $region43: #{tpu_custom_call.1} parent=39 // pred_region
              // Predicated region
              $region56: #{tpu_custom_call.1} parent=43 // pred_check
                _
              $region57: #{tpu_custom_call.1} parent=43 // pred_check_branch
                %2762 = sbr.rel (0) target = $region59
              $region58: #{tpu_custom_call.1} parent=43 // pred_region
                loop: start=0, step=1, limit=1
                $region60: #{tpu_custom_call.1} parent=58 // loop_pre_header
                  _
                $region61: #{tpu_custom_call.1} parent=58 // loop_header
                  %s2764 = sphi 0, %s2768
                  %p2765 = scmp.ge.s32.totalorder %s2764, 1
                  %s2769 = sphi %s2608, %s2608
                  %s2770 = sphi %s2616, %s2616
                $region62: #{tpu_custom_call.1} parent=58 // loop_header_branch
                  %2767 = sbr.rel (%p2765) target = $region66
                $region63: #{tpu_custom_call.1} parent=58 // loop_body
                  _
                $region64: #{tpu_custom_call.1} parent=58 // loop_footer
                  %s2768 = sadd.s32 1, %s2764
                $region65: #{tpu_custom_call.1} parent=58 // loop_footer_branch
                  %2763 = sbr.rel target = $region61
                $region66: #{tpu_custom_call.1} parent=58 // loop_exit
                  _
                %s2772 = ssub.s32 16, 1
                loop: start=0, step=1, limit=1
                $region67: #{tpu_custom_call.1} parent=58 // loop_pre_header
                  _
                $region68: #{tpu_custom_call.1} parent=58 // loop_header
                  %s2774 = sphi 0, %s2778
                  %p2775 = scmp.ge.s32.totalorder %s2774, 1
                  %s2779 = sphi %s2608, %s2608
                  %s2780 = sphi %s2616, %s2616
                $region69: #{tpu_custom_call.1} parent=58 // loop_header_branch
                  %2777 = sbr.rel (%p2775) target = $region73
                $region70: #{tpu_custom_call.1} parent=58 // loop_body
                  %v2781 = vld [vmem:[%s2779] sm:%s2772]
                  %2782 = vst [vmem:[%s2780] sm:%s2772] %v2781
                  %v2783 = vld [vmem:[%s2779 + $0x4] sm:%s2772]
                  %2784 = vst [vmem:[%s2780 + $0x4] sm:%s2772] %v2783
                  %v2785 = vld [vmem:[%s2779 + $0x8] sm:%s2772]
                  %2786 = vst [vmem:[%s2780 + $0x8] sm:%s2772] %v2785
                  %v2787 = vld [vmem:[%s2779 + $0xc] sm:%s2772]
                  %2788 = vst [vmem:[%s2780 + $0xc] sm:%s2772] %v2787
                  %v2789 = vld [vmem:[%s2779 + $0x10] sm:%s2772]
                  %2790 = vst [vmem:[%s2780 + $0x10] sm:%s2772] %v2789
                  %v2791 = vld [vmem:[%s2779 + $0x14] sm:%s2772]
                  %2792 = vst [vmem:[%s2780 + $0x14] sm:%s2772] %v2791
                  %v2793 = vld [vmem:[%s2779 + $0x18] sm:%s2772]
                  %2794 = vst [vmem:[%s2780 + $0x18] sm:%s2772] %v2793
                  %v2795 = vld [vmem:[%s2779 + $0x1c] sm:%s2772]
                  %2796 = vst [vmem:[%s2780 + $0x1c] sm:%s2772] %v2795
                  %v2797 = vld [vmem:[%s2779 + $0x20] sm:%s2772]
                  %2798 = vst [vmem:[%s2780 + $0x20] sm:%s2772] %v2797
                  %v2799 = vld [vmem:[%s2779 + $0x24] sm:%s2772]
                  %2800 = vst [vmem:[%s2780 + $0x24] sm:%s2772] %v2799
                  %v2801 = vld [vmem:[%s2779 + $0x28] sm:%s2772]
                  %2802 = vst [vmem:[%s2780 + $0x28] sm:%s2772] %v2801
                  %v2803 = vld [vmem:[%s2779 + $0x2c] sm:%s2772]
                  %2804 = vst [vmem:[%s2780 + $0x2c] sm:%s2772] %v2803
                  %v2805 = vld [vmem:[%s2779 + $0x30] sm:%s2772]
                  %2806 = vst [vmem:[%s2780 + $0x30] sm:%s2772] %v2805
                  %v2807 = vld [vmem:[%s2779 + $0x34] sm:%s2772]
                  %2808 = vst [vmem:[%s2780 + $0x34] sm:%s2772] %v2807
                  %v2809 = vld [vmem:[%s2779 + $0x38] sm:%s2772]
                  %2810 = vst [vmem:[%s2780 + $0x38] sm:%s2772] %v2809
                  %v2811 = vld [vmem:[%s2779 + $0x3c] sm:%s2772]
                  %2812 = vst [vmem:[%s2780 + $0x3c] sm:%s2772] %v2811
                  %v2813 = vld [vmem:[%s2779 + $0x40] sm:%s2772]
                  %2814 = vst [vmem:[%s2780 + $0x80] sm:%s2772] %v2813
                  %v2815 = vld [vmem:[%s2779 + $0x44] sm:%s2772]
                  %2816 = vst [vmem:[%s2780 + $0x84] sm:%s2772] %v2815
                  %v2817 = vld [vmem:[%s2779 + $0x48] sm:%s2772]
                  %2818 = vst [vmem:[%s2780 + $0x88] sm:%s2772] %v2817
                  %v2819 = vld [vmem:[%s2779 + $0x4c] sm:%s2772]
                  %2820 = vst [vmem:[%s2780 + $0x8c] sm:%s2772] %v2819
                  %v2821 = vld [vmem:[%s2779 + $0x50] sm:%s2772]
                  %2822 = vst [vmem:[%s2780 + $0x90] sm:%s2772] %v2821
                  %v2823 = vld [vmem:[%s2779 + $0x54] sm:%s2772]
                  %2824 = vst [vmem:[%s2780 + $0x94] sm:%s2772] %v2823
                  %v2825 = vld [vmem:[%s2779 + $0x58] sm:%s2772]
                  %2826 = vst [vmem:[%s2780 + $0x98] sm:%s2772] %v2825
                  %v2827 = vld [vmem:[%s2779 + $0x5c] sm:%s2772]
                  %2828 = vst [vmem:[%s2780 + $0x9c] sm:%s2772] %v2827
                  %v2829 = vld [vmem:[%s2779 + $0x60] sm:%s2772]
                  %2830 = vst [vmem:[%s2780 + $0xa0] sm:%s2772] %v2829
                  %v2831 = vld [vmem:[%s2779 + $0x64] sm:%s2772]
                  %2832 = vst [vmem:[%s2780 + $0xa4] sm:%s2772] %v2831
                  %v2833 = vld [vmem:[%s2779 + $0x68] sm:%s2772]
                  %2834 = vst [vmem:[%s2780 + $0xa8] sm:%s2772] %v2833
                  %v2835 = vld [vmem:[%s2779 + $0x6c] sm:%s2772]
                  %2836 = vst [vmem:[%s2780 + $0xac] sm:%s2772] %v2835
                  %v2837 = vld [vmem:[%s2779 + $0x70] sm:%s2772]
                  %2838 = vst [vmem:[%s2780 + $0xb0] sm:%s2772] %v2837
                  %v2839 = vld [vmem:[%s2779 + $0x74] sm:%s2772]
                  %2840 = vst [vmem:[%s2780 + $0xb4] sm:%s2772] %v2839
                  %v2841 = vld [vmem:[%s2779 + $0x78] sm:%s2772]
                  %2842 = vst [vmem:[%s2780 + $0xb8] sm:%s2772] %v2841
                  %v2843 = vld [vmem:[%s2779 + $0x7c] sm:%s2772]
                  %2844 = vst [vmem:[%s2780 + $0xbc] sm:%s2772] %v2843
                  %v2845 = vld [vmem:[%s2779 + $0x80] sm:%s2772]
                  %2846 = vst [vmem:[%s2780 + $0x100] sm:%s2772] %v2845
                  %v2847 = vld [vmem:[%s2779 + $0x84] sm:%s2772]
                  %2848 = vst [vmem:[%s2780 + $0x104] sm:%s2772] %v2847
                  %v2849 = vld [vmem:[%s2779 + $0x88] sm:%s2772]
                  %2850 = vst [vmem:[%s2780 + $0x108] sm:%s2772] %v2849
                  %v2851 = vld [vmem:[%s2779 + $0x8c] sm:%s2772]
                  %2852 = vst [vmem:[%s2780 + $0x10c] sm:%s2772] %v2851
                  %v2853 = vld [vmem:[%s2779 + $0x90] sm:%s2772]
                  %2854 = vst [vmem:[%s2780 + $0x110] sm:%s2772] %v2853
                  %v2855 = vld [vmem:[%s2779 + $0x94] sm:%s2772]
                  %2856 = vst [vmem:[%s2780 + $0x114] sm:%s2772] %v2855
                  %v2857 = vld [vmem:[%s2779 + $0x98] sm:%s2772]
                  %2858 = vst [vmem:[%s2780 + $0x118] sm:%s2772] %v2857
                  %v2859 = vld [vmem:[%s2779 + $0x9c] sm:%s2772]
                  %2860 = vst [vmem:[%s2780 + $0x11c] sm:%s2772] %v2859
                  %v2861 = vld [vmem:[%s2779 + $0xa0] sm:%s2772]
                  %2862 = vst [vmem:[%s2780 + $0x120] sm:%s2772] %v2861
                  %v2863 = vld [vmem:[%s2779 + $0xa4] sm:%s2772]
                  %2864 = vst [vmem:[%s2780 + $0x124] sm:%s2772] %v2863
                  %v2865 = vld [vmem:[%s2779 + $0xa8] sm:%s2772]
                  %2866 = vst [vmem:[%s2780 + $0x128] sm:%s2772] %v2865
                  %v2867 = vld [vmem:[%s2779 + $0xac] sm:%s2772]
                  %2868 = vst [vmem:[%s2780 + $0x12c] sm:%s2772] %v2867
                  %v2869 = vld [vmem:[%s2779 + $0xb0] sm:%s2772]
                  %2870 = vst [vmem:[%s2780 + $0x130] sm:%s2772] %v2869
                  %v2871 = vld [vmem:[%s2779 + $0xb4] sm:%s2772]
                  %2872 = vst [vmem:[%s2780 + $0x134] sm:%s2772] %v2871
                  %v2873 = vld [vmem:[%s2779 + $0xb8] sm:%s2772]
                  %2874 = vst [vmem:[%s2780 + $0x138] sm:%s2772] %v2873
                  %v2875 = vld [vmem:[%s2779 + $0xbc] sm:%s2772]
                  %2876 = vst [vmem:[%s2780 + $0x13c] sm:%s2772] %v2875
                  %v2877 = vld [vmem:[%s2779 + $0xc0] sm:%s2772]
                  %2878 = vst [vmem:[%s2780 + $0x180] sm:%s2772] %v2877
                  %v2879 = vld [vmem:[%s2779 + $0xc4] sm:%s2772]
                  %2880 = vst [vmem:[%s2780 + $0x184] sm:%s2772] %v2879
                  %v2881 = vld [vmem:[%s2779 + $0xc8] sm:%s2772]
                  %2882 = vst [vmem:[%s2780 + $0x188] sm:%s2772] %v2881
                  %v2883 = vld [vmem:[%s2779 + $0xcc] sm:%s2772]
                  %2884 = vst [vmem:[%s2780 + $0x18c] sm:%s2772] %v2883
                  %v2885 = vld [vmem:[%s2779 + $0xd0] sm:%s2772]
                  %2886 = vst [vmem:[%s2780 + $0x190] sm:%s2772] %v2885
                  %v2887 = vld [vmem:[%s2779 + $0xd4] sm:%s2772]
                  %2888 = vst [vmem:[%s2780 + $0x194] sm:%s2772] %v2887
                  %v2889 = vld [vmem:[%s2779 + $0xd8] sm:%s2772]
                  %2890 = vst [vmem:[%s2780 + $0x198] sm:%s2772] %v2889
                  %v2891 = vld [vmem:[%s2779 + $0xdc] sm:%s2772]
                  %2892 = vst [vmem:[%s2780 + $0x19c] sm:%s2772] %v2891
                  %v2893 = vld [vmem:[%s2779 + $0xe0] sm:%s2772]
                  %2894 = vst [vmem:[%s2780 + $0x1a0] sm:%s2772] %v2893
                  %v2895 = vld [vmem:[%s2779 + $0xe4] sm:%s2772]
                  %2896 = vst [vmem:[%s2780 + $0x1a4] sm:%s2772] %v2895
                  %v2897 = vld [vmem:[%s2779 + $0xe8] sm:%s2772]
                  %2898 = vst [vmem:[%s2780 + $0x1a8] sm:%s2772] %v2897
                  %v2899 = vld [vmem:[%s2779 + $0xec] sm:%s2772]
                  %2900 = vst [vmem:[%s2780 + $0x1ac] sm:%s2772] %v2899
                  %v2901 = vld [vmem:[%s2779 + $0xf0] sm:%s2772]
                  %2902 = vst [vmem:[%s2780 + $0x1b0] sm:%s2772] %v2901
                  %v2903 = vld [vmem:[%s2779 + $0xf4] sm:%s2772]
                  %2904 = vst [vmem:[%s2780 + $0x1b4] sm:%s2772] %v2903
                  %v2905 = vld [vmem:[%s2779 + $0xf8] sm:%s2772]
                  %2906 = vst [vmem:[%s2780 + $0x1b8] sm:%s2772] %v2905
                  %v2907 = vld [vmem:[%s2779 + $0xfc] sm:%s2772]
                  %2908 = vst [vmem:[%s2780 + $0x1bc] sm:%s2772] %v2907
                $region71: #{tpu_custom_call.1} parent=58 // loop_footer
                  %s2778 = sadd.s32 1, %s2774
                $region72: #{tpu_custom_call.1} parent=58 // loop_footer_branch
                  %2773 = sbr.rel target = $region68
                $region73: #{tpu_custom_call.1} parent=58 // loop_exit
                  _
              $region59: #{tpu_custom_call.1} parent=43 // pred_fallthru
                _
            $region44: #{tpu_custom_call.1} parent=39 // pred_fallthru
              _
            // Predicated region
            $region45: #{tpu_custom_call.1} parent=39 // pred_check
              _
            $region46: #{tpu_custom_call.1} parent=39 // pred_check_branch
              %2622 = sbr.rel (0) target = $region48
            $region47: #{tpu_custom_call.1} parent=39 // pred_region
              %s2624 = ssub.s32 16, 1
              loop: start=0, step=1, limit=1
              $region49: #{tpu_custom_call.1} parent=47 // loop_pre_header
                _
              $region50: #{tpu_custom_call.1} parent=47 // loop_header
                %s2626 = sphi 0, %s2630
                %p2627 = scmp.ge.s32.totalorder %s2626, 1
                %s2631 = sphi %s2608, %s2608
                %s2632 = sphi %s2616, %s2616
              $region51: #{tpu_custom_call.1} parent=47 // loop_header_branch
                %2629 = sbr.rel (%p2627) target = $region55
              $region52: #{tpu_custom_call.1} parent=47 // loop_body
                %v2633 = vld [vmem:[%s2631] sm:%s2624]
                %2634 = vst [vmem:[%s2632] sm:%s2624] %v2633
                %v2635 = vld [vmem:[%s2631 + $0x4] sm:%s2624]
                %2636 = vst [vmem:[%s2632 + $0x4] sm:%s2624] %v2635
                %v2637 = vld [vmem:[%s2631 + $0x8] sm:%s2624]
                %2638 = vst [vmem:[%s2632 + $0x8] sm:%s2624] %v2637
                %v2639 = vld [vmem:[%s2631 + $0xc] sm:%s2624]
                %2640 = vst [vmem:[%s2632 + $0xc] sm:%s2624] %v2639
                %v2641 = vld [vmem:[%s2631 + $0x10] sm:%s2624]
                %2642 = vst [vmem:[%s2632 + $0x10] sm:%s2624] %v2641
                %v2643 = vld [vmem:[%s2631 + $0x14] sm:%s2624]
                %2644 = vst [vmem:[%s2632 + $0x14] sm:%s2624] %v2643
                %v2645 = vld [vmem:[%s2631 + $0x18] sm:%s2624]
                %2646 = vst [vmem:[%s2632 + $0x18] sm:%s2624] %v2645
                %v2647 = vld [vmem:[%s2631 + $0x1c] sm:%s2624]
                %2648 = vst [vmem:[%s2632 + $0x1c] sm:%s2624] %v2647
                %v2649 = vld [vmem:[%s2631 + $0x20] sm:%s2624]
                %2650 = vst [vmem:[%s2632 + $0x20] sm:%s2624] %v2649
                %v2651 = vld [vmem:[%s2631 + $0x24] sm:%s2624]
                %2652 = vst [vmem:[%s2632 + $0x24] sm:%s2624] %v2651
                %v2653 = vld [vmem:[%s2631 + $0x28] sm:%s2624]
                %2654 = vst [vmem:[%s2632 + $0x28] sm:%s2624] %v2653
                %v2655 = vld [vmem:[%s2631 + $0x2c] sm:%s2624]
                %2656 = vst [vmem:[%s2632 + $0x2c] sm:%s2624] %v2655
                %v2657 = vld [vmem:[%s2631 + $0x30] sm:%s2624]
                %2658 = vst [vmem:[%s2632 + $0x30] sm:%s2624] %v2657
                %v2659 = vld [vmem:[%s2631 + $0x34] sm:%s2624]
                %2660 = vst [vmem:[%s2632 + $0x34] sm:%s2624] %v2659
                %v2661 = vld [vmem:[%s2631 + $0x38] sm:%s2624]
                %2662 = vst [vmem:[%s2632 + $0x38] sm:%s2624] %v2661
                %v2663 = vld [vmem:[%s2631 + $0x3c] sm:%s2624]
                %2664 = vst [vmem:[%s2632 + $0x3c] sm:%s2624] %v2663
                %v2665 = vld [vmem:[%s2631 + $0x40] sm:%s2624]
                %2666 = vst [vmem:[%s2632 + $0x80] sm:%s2624] %v2665
                %v2667 = vld [vmem:[%s2631 + $0x44] sm:%s2624]
                %2668 = vst [vmem:[%s2632 + $0x84] sm:%s2624] %v2667
                %v2669 = vld [vmem:[%s2631 + $0x48] sm:%s2624]
                %2670 = vst [vmem:[%s2632 + $0x88] sm:%s2624] %v2669
                %v2671 = vld [vmem:[%s2631 + $0x4c] sm:%s2624]
                %2672 = vst [vmem:[%s2632 + $0x8c] sm:%s2624] %v2671
                %v2673 = vld [vmem:[%s2631 + $0x50] sm:%s2624]
                %2674 = vst [vmem:[%s2632 + $0x90] sm:%s2624] %v2673
                %v2675 = vld [vmem:[%s2631 + $0x54] sm:%s2624]
                %2676 = vst [vmem:[%s2632 + $0x94] sm:%s2624] %v2675
                %v2677 = vld [vmem:[%s2631 + $0x58] sm:%s2624]
                %2678 = vst [vmem:[%s2632 + $0x98] sm:%s2624] %v2677
                %v2679 = vld [vmem:[%s2631 + $0x5c] sm:%s2624]
                %2680 = vst [vmem:[%s2632 + $0x9c] sm:%s2624] %v2679
                %v2681 = vld [vmem:[%s2631 + $0x60] sm:%s2624]
                %2682 = vst [vmem:[%s2632 + $0xa0] sm:%s2624] %v2681
                %v2683 = vld [vmem:[%s2631 + $0x64] sm:%s2624]
                %2684 = vst [vmem:[%s2632 + $0xa4] sm:%s2624] %v2683
                %v2685 = vld [vmem:[%s2631 + $0x68] sm:%s2624]
                %2686 = vst [vmem:[%s2632 + $0xa8] sm:%s2624] %v2685
                %v2687 = vld [vmem:[%s2631 + $0x6c] sm:%s2624]
                %2688 = vst [vmem:[%s2632 + $0xac] sm:%s2624] %v2687
                %v2689 = vld [vmem:[%s2631 + $0x70] sm:%s2624]
                %2690 = vst [vmem:[%s2632 + $0xb0] sm:%s2624] %v2689
                %v2691 = vld [vmem:[%s2631 + $0x74] sm:%s2624]
                %2692 = vst [vmem:[%s2632 + $0xb4] sm:%s2624] %v2691
                %v2693 = vld [vmem:[%s2631 + $0x78] sm:%s2624]
                %2694 = vst [vmem:[%s2632 + $0xb8] sm:%s2624] %v2693
                %v2695 = vld [vmem:[%s2631 + $0x7c] sm:%s2624]
                %2696 = vst [vmem:[%s2632 + $0xbc] sm:%s2624] %v2695
                %v2697 = vld [vmem:[%s2631 + $0x80] sm:%s2624]
                %2698 = vst [vmem:[%s2632 + $0x100] sm:%s2624] %v2697
                %v2699 = vld [vmem:[%s2631 + $0x84] sm:%s2624]
                %2700 = vst [vmem:[%s2632 + $0x104] sm:%s2624] %v2699
                %v2701 = vld [vmem:[%s2631 + $0x88] sm:%s2624]
                %2702 = vst [vmem:[%s2632 + $0x108] sm:%s2624] %v2701
                %v2703 = vld [vmem:[%s2631 + $0x8c] sm:%s2624]
                %2704 = vst [vmem:[%s2632 + $0x10c] sm:%s2624] %v2703
                %v2705 = vld [vmem:[%s2631 + $0x90] sm:%s2624]
                %2706 = vst [vmem:[%s2632 + $0x110] sm:%s2624] %v2705
                %v2707 = vld [vmem:[%s2631 + $0x94] sm:%s2624]
                %2708 = vst [vmem:[%s2632 + $0x114] sm:%s2624] %v2707
                %v2709 = vld [vmem:[%s2631 + $0x98] sm:%s2624]
                %2710 = vst [vmem:[%s2632 + $0x118] sm:%s2624] %v2709
                %v2711 = vld [vmem:[%s2631 + $0x9c] sm:%s2624]
                %2712 = vst [vmem:[%s2632 + $0x11c] sm:%s2624] %v2711
                %v2713 = vld [vmem:[%s2631 + $0xa0] sm:%s2624]
                %2714 = vst [vmem:[%s2632 + $0x120] sm:%s2624] %v2713
                %v2715 = vld [vmem:[%s2631 + $0xa4] sm:%s2624]
                %2716 = vst [vmem:[%s2632 + $0x124] sm:%s2624] %v2715
                %v2717 = vld [vmem:[%s2631 + $0xa8] sm:%s2624]
                %2718 = vst [vmem:[%s2632 + $0x128] sm:%s2624] %v2717
                %v2719 = vld [vmem:[%s2631 + $0xac] sm:%s2624]
                %2720 = vst [vmem:[%s2632 + $0x12c] sm:%s2624] %v2719
                %v2721 = vld [vmem:[%s2631 + $0xb0] sm:%s2624]
                %2722 = vst [vmem:[%s2632 + $0x130] sm:%s2624] %v2721
                %v2723 = vld [vmem:[%s2631 + $0xb4] sm:%s2624]
                %2724 = vst [vmem:[%s2632 + $0x134] sm:%s2624] %v2723
                %v2725 = vld [vmem:[%s2631 + $0xb8] sm:%s2624]
                %2726 = vst [vmem:[%s2632 + $0x138] sm:%s2624] %v2725
                %v2727 = vld [vmem:[%s2631 + $0xbc] sm:%s2624]
                %2728 = vst [vmem:[%s2632 + $0x13c] sm:%s2624] %v2727
                %v2729 = vld [vmem:[%s2631 + $0xc0] sm:%s2624]
                %2730 = vst [vmem:[%s2632 + $0x180] sm:%s2624] %v2729
                %v2731 = vld [vmem:[%s2631 + $0xc4] sm:%s2624]
                %2732 = vst [vmem:[%s2632 + $0x184] sm:%s2624] %v2731
                %v2733 = vld [vmem:[%s2631 + $0xc8] sm:%s2624]
                %2734 = vst [vmem:[%s2632 + $0x188] sm:%s2624] %v2733
                %v2735 = vld [vmem:[%s2631 + $0xcc] sm:%s2624]
                %2736 = vst [vmem:[%s2632 + $0x18c] sm:%s2624] %v2735
                %v2737 = vld [vmem:[%s2631 + $0xd0] sm:%s2624]
                %2738 = vst [vmem:[%s2632 + $0x190] sm:%s2624] %v2737
                %v2739 = vld [vmem:[%s2631 + $0xd4] sm:%s2624]
                %2740 = vst [vmem:[%s2632 + $0x194] sm:%s2624] %v2739
                %v2741 = vld [vmem:[%s2631 + $0xd8] sm:%s2624]
                %2742 = vst [vmem:[%s2632 + $0x198] sm:%s2624] %v2741
                %v2743 = vld [vmem:[%s2631 + $0xdc] sm:%s2624]
                %2744 = vst [vmem:[%s2632 + $0x19c] sm:%s2624] %v2743
                %v2745 = vld [vmem:[%s2631 + $0xe0] sm:%s2624]
                %2746 = vst [vmem:[%s2632 + $0x1a0] sm:%s2624] %v2745
                %v2747 = vld [vmem:[%s2631 + $0xe4] sm:%s2624]
                %2748 = vst [vmem:[%s2632 + $0x1a4] sm:%s2624] %v2747
                %v2749 = vld [vmem:[%s2631 + $0xe8] sm:%s2624]
                %2750 = vst [vmem:[%s2632 + $0x1a8] sm:%s2624] %v2749
                %v2751 = vld [vmem:[%s2631 + $0xec] sm:%s2624]
                %2752 = vst [vmem:[%s2632 + $0x1ac] sm:%s2624] %v2751
                %v2753 = vld [vmem:[%s2631 + $0xf0] sm:%s2624]
                %2754 = vst [vmem:[%s2632 + $0x1b0] sm:%s2624] %v2753
                %v2755 = vld [vmem:[%s2631 + $0xf4] sm:%s2624]
                %2756 = vst [vmem:[%s2632 + $0x1b4] sm:%s2624] %v2755
                %v2757 = vld [vmem:[%s2631 + $0xf8] sm:%s2624]
                %2758 = vst [vmem:[%s2632 + $0x1b8] sm:%s2624] %v2757
                %v2759 = vld [vmem:[%s2631 + $0xfc] sm:%s2624]
                %2760 = vst [vmem:[%s2632 + $0x1bc] sm:%s2624] %v2759
              $region53: #{tpu_custom_call.1} parent=47 // loop_footer
                %s2630 = sadd.s32 1, %s2626
              $region54: #{tpu_custom_call.1} parent=47 // loop_footer_branch
                %2625 = sbr.rel target = $region50
              $region55: #{tpu_custom_call.1} parent=47 // loop_exit
                _
            $region48: #{tpu_custom_call.1} parent=39 // pred_fallthru
              _
          $region40: #{tpu_custom_call.1} parent=35 // pred_fallthru
            _
          %2909 = vnop
        $region36: #{tpu_custom_call.1} parent=31 // pred_fallthru
          _
      $region32: #{tpu_custom_call.1} parent=5 // pred_fallthru
        _
      %p2910 = scmp.le.s32.totalorder 2, %s9
      // Predicated region
      $region74: #{tpu_custom_call.1} parent=5 // pred_check
        %p2911 = pneg %p2910
      $region75: #{tpu_custom_call.1} parent=5 // pred_check_branch
        %2913 = sbr.rel (%p2911) target = $region77
      $region76: #{tpu_custom_call.1} parent=5 // pred_region
        %s2914 = ssub.s32 %s9, 2
        // Predicated region
        $region78: #{tpu_custom_call.1} parent=76 // pred_check
          %p2915 = pneg %p120
        $region79: #{tpu_custom_call.1} parent=76 // pred_check_branch
          %2917 = sbr.rel (%p2915) target = $region81
        $region80: #{tpu_custom_call.1} parent=76 // pred_region
          %s2918 = sand.u32 %s105, 1
          %s2919 = sand.u32 %s105, 1
          %s2920 = smul.addr %s2919, 256
          %s2921 = scalar_lea.vmem [#allocation2], %s2920
        $region81: #{tpu_custom_call.1} parent=76 // pred_fallthru
          _
      $region77: #{tpu_custom_call.1} parent=5 // pred_fallthru
        _
    $region6: #{tpu_custom_call.1} parent=1 // loop_footer
      %s13 = sadd.s32 1, %s9
    $region7: #{tpu_custom_call.1} parent=1 // loop_footer_branch
      %8 = sbr.rel target = $region3
    $region8: #{tpu_custom_call.1} parent=1 // loop_exit
      _

</llo_original>
